<compile_context>
chip_gen: v5e
topology: v5e:2x2
jax: 0.10.0
libtpu: 0.0.40
codegen_flags: <defaults>
</compile_context>

<pallas_src>
import numpy as np

import jax
import jax.numpy as jnp
from jax.experimental import pallas as pl
from jax.experimental.pallas import tpu as pltpu

BN_EPS = 1e-5
LRELU_SLOPE = 0.2
MXU_DTYPE = jnp.bfloat16   # operands of the weight matmuls (f32 accumulate)


# ---------------------------------------------------------------------------
# In-kernel building blocks (pure 2-D matmul + elementwise ops only)
# ---------------------------------------------------------------------------
def _convt_taps(x, s_ref, a_ref):
    """One ConvTranspose2d layer on the (B*H, W*Cin) layout.

    x:     (B*H_in, W_in*Cin) f32 activation.
    s_ref: (k, W_in*Cin, W_out*Cout)  width-resampling x flipped weights.
    a_ref: (k, B*H_out, B*H_in)       0/1 height/row selection matrices.
    returns (B*H_out, W_out*Cout) f32.
    """
    k = s_ref.shape[0]
    xm = x.astype(MXU_DTYPE)                       # bf16 into the MXU
    acc = jnp.zeros((a_ref.shape[1], s_ref.shape[2]), jnp.float32)
    for ki in range(k):                            # static, k <= 4
        t = jnp.dot(xm, s_ref[ki], preferred_element_type=jnp.float32)
        acc = acc + jnp.dot(a_ref[ki], t, preferred_element_type=jnp.float32)
    return acc


def _bn_lrelu(y, g_ref, gb_ref):
    """BatchNorm2d (training-mode batch stats) + LeakyReLU(0.2).

    y:      (R, Wo*C) f32, rows = (b, oh), cols = (ow, c).
    g_ref:  (Wo*C, C) 0/1 column->channel reduction matrix.
    gb_ref: (2, C) stacked [gamma; beta].
    """
    G = g_ref[...]
    C = G.shape[1]
    n = y.shape[0] * (y.shape[1] // C)             # B*Ho*Wo elements / channel
    s1 = jnp.sum(y, axis=0, keepdims=True)         # (1, Wo*C)
    s2 = jnp.sum(y * y, axis=0, keepdims=True)     # single pass sum / sumsq
    mean = jnp.dot(s1, G, preferred_element_type=jnp.float32) / n   # (1, C)
    ex2 = jnp.dot(s2, G, preferred_element_type=jnp.float32) / n
    var = jnp.maximum(ex2 - mean * mean, 0.0)      # biased variance, f32
    gamma = gb_ref[0:1, :]
    beta = gb_ref[1:2, :]
    scale = gamma * jax.lax.rsqrt(var + BN_EPS)    # (1, C)
    shift = beta - mean * scale
    # expand per-channel scale/shift back to the (ow, c) column layout
    scale_c = jnp.dot(scale, G.T, preferred_element_type=jnp.float32)
    shift_c = jnp.dot(shift, G.T, preferred_element_type=jnp.float32)
    yn = y * scale_c + shift_c
    return jnp.where(yn >= 0.0, yn, LRELU_SLOPE * yn)


def _generator_kernel(z_ref,
                      s0_ref, a0_ref, g0_ref, gb0_ref,
                      s1_ref, a1_ref, g1_ref, gb1_ref,
                      s2_ref, a2_ref, g2_ref, gb2_ref,
                      s3_ref, a3_ref,
                      o_ref):
    # layer 0: merged text+noise branches, 1x1 -> 4x4, BN + LeakyReLU
    h = _convt_taps(z_ref[...], s0_ref, a0_ref)
    h = _bn_lrelu(h, g0_ref, gb0_ref)
    # layer 1: 4x4 -> 7x7, BN + LeakyReLU
    h = _convt_taps(h, s1_ref, a1_ref)
    h = _bn_lrelu(h, g1_ref, gb1_ref)
    # layer 2: 7x7 -> 14x14, BN + LeakyReLU
    h = _convt_taps(h, s2_ref, a2_ref)
    h = _bn_lrelu(h, g2_ref, gb2_ref)
    # layer 3: 14x14 -> 28x28, Tanh
    h = _convt_taps(h, s3_ref, a3_ref)
    o_ref[...] = jnp.tanh(h).astype(o_ref.dtype)


# ---------------------------------------------------------------------------
# Host-side constant / weight-matrix builders (tiny, run under jit)
# ---------------------------------------------------------------------------
def _build_S(w, *, k, s, p, w_in, w_out):
    """S[ki, iw*Cin+ci, ow*Cout+co] = Wflip[ki, pad+s*iw-ow, ci, co] (0 if oob).

    w is the PyTorch ConvTranspose2d weight, shape (Cin, Cout, k, k).
    """
    cin, cout = w.shape[0], w.shape[1]
    pad = k - 1 - p
    # Wflip[ki, kj, ci, co] = w[ci, co, k-1-ki, k-1-kj]
    wf = jnp.flip(w, axis=(2, 3)).transpose(2, 3, 0, 1)        # (k, k, Cin, Cout)
    iw = np.arange(w_in)[:, None]
    ow = np.arange(w_out)[None, :]
    kj = pad + s * iw - ow                                     # (w_in, w_out)
    valid = ((kj >= 0) & (kj < k)).astype(np.float32)
    kj_c = np.clip(kj, 0, k - 1)
    S = wf[:, kj_c] * valid[None, :, :, None, None]            # (k,w_in,w_out,Cin,Cout)
    S = S.transpose(0, 1, 3, 2, 4).reshape(k, w_in * cin, w_out * cout)
    return S.astype(MXU_DTYPE)


def _build_A(*, k, s, p, h_in, h_out, batch):
    """A[ki, b*h_out+oh, b*h_in+ih] = 1 iff oh = pad + s*ih - ki (same batch)."""
    pad = k - 1 - p
    A = np.zeros((k, batch * h_out, batch * h_in), np.float32)
    for ki in range(k):
        a = np.zeros((h_out, h_in), np.float32)
        for ih in range(h_in):
            oh = pad + s * ih - ki
            if 0 <= oh < h_out:
                a[oh, ih] = 1.0
        A[ki] = np.kron(np.eye(batch, dtype=np.float32), a)
    return jnp.asarray(A)


def _build_G(w_out, c):
    """G[ow*c+ci, ci'] = 1 iff ci == ci' (column -> channel reduction)."""
    return jnp.asarray(np.tile(np.eye(c, dtype=np.float32), (w_out, 1)))


def _full_spec(x):
    nd = x.ndim
    return pl.BlockSpec(x.shape, lambda i, _nd=nd: (0,) * _nd)


# ---------------------------------------------------------------------------
# Generator: params + fused forward
# ---------------------------------------------------------------------------
def init_generator_params(key, nc, nz, ngf):
    ks = jax.random.split(key, 5)
    std = 0.02  # DCGAN-style init, deterministic given the key

    def conv_w(k, shape):
        return std * jax.random.normal(k, shape, dtype=jnp.float32)

    def bn(c):
        return jnp.ones((c,), jnp.float32), jnp.zeros((c,), jnp.float32)

    p = {}
    p["w_text"] = conv_w(ks[0], (nz, ngf * 2, 4, 4))
    p["g_text"], p["b_text"] = bn(ngf * 2)
    p["w_noise"] = conv_w(ks[1], (nz, ngf * 2, 4, 4))
    p["g_noise"], p["b_noise"] = bn(ngf * 2)
    p["w1"] = conv_w(ks[2], (ngf * 4, ngf * 2, 3, 3))
    p["g1"], p["b1"] = bn(ngf * 2)
    p["w2"] = conv_w(ks[3], (ngf * 2, ngf, 4, 4))
    p["g2"], p["b2"] = bn(ngf)
    p["w3"] = conv_w(ks[4], (ngf, nc, 4, 4))
    return p


@jax.jit
def generator_forward(params, text, noise):
    assert text.shape[2:] == (1, 1) and noise.shape[2:] == (1, 1)
    B, nz = text.shape[0], text.shape[1]
    c0 = params["w_text"].shape[1]     # ngf*2 (per branch)
    c1 = params["w1"].shape[1]         # ngf*2
    c2 = params["w2"].shape[1]         # ngf
    nc = params["w3"].shape[1]

    # merged input: (B, 2*nz); merged layer-0 weight is block-diagonal so the
    # two branches + the channel concat become a single matmul layer.
    z = jnp.concatenate([text.reshape(B, nz), noise.reshape(B, nz)], axis=1)
    w0 = jnp.zeros((2 * nz, 2 * c0, 4, 4), jnp.float32)
    w0 = w0.at[:nz, :c0].set(params["w_text"]).at[nz:, c0:].set(params["w_noise"])
    gb0 = jnp.stack([jnp.concatenate([params["g_text"], params["g_noise"]]),
                     jnp.concatenate([params["b_text"], params["b_noise"]])])
    gb1 = jnp.stack([params["g1"], params["b1"]])
    gb2 = jnp.stack([params["g2"], params["b2"]])

    # per-layer folded weight / selection constants (all tiny)
    S0 = _build_S(w0,           k=4, s=1, p=0, w_in=1,  w_out=4)
    S1 = _build_S(params["w1"], k=3, s=2, p=1, w_in=4,  w_out=7)
    S2 = _build_S(params["w2"], k=4, s=2, p=1, w_in=7,  w_out=14)
    S3 = _build_S(params["w3"], k=4, s=2, p=1, w_in=14, w_out=28)
    A0 = _build_A(k=4, s=1, p=0, h_in=1,  h_out=4,  batch=B)
    A1 = _build_A(k=3, s=2, p=1, h_in=4,  h_out=7,  batch=B)
    A2 = _build_A(k=4, s=2, p=1, h_in=7,  h_out=14, batch=B)
    A3 = _build_A(k=4, s=2, p=1, h_in=14, h_out=28, batch=B)
    G0 = _build_G(4, 2 * c0)
    G1 = _build_G(7, c1)
    G2 = _build_G(14, c2)

    args = (z,
            S0, A0, G0, gb0,
            S1, A1, G1, gb1,
            S2, A2, G2, gb2,
            S3, A3)

    out2d = pl.pallas_call(
        _generator_kernel,
        out_shape=jax.ShapeDtypeStruct((B * 28, 28 * nc), jnp.float32),
        grid=(1,),
        in_specs=[_full_spec(a) for a in args],
        out_specs=pl.BlockSpec((B * 28, 28 * nc), lambda i: (0, 0)),
        compiler_params=pltpu.CompilerParams(
            dimension_semantics=("arbitrary",)),
    )(*args)

    # single tiny layout fix-up back to the public NCHW layout
    return out2d.reshape(B, 28, 28, nc).transpose(0, 3, 1, 2)


# ---------------------------------------------------------------------------
# Pure-JAX reference (mirrors the PyTorch module), for a numerical cross-check
# ---------------------------------------------------------------------------
def _ref_convt(x, w, s, p):
    k = w.shape[2]
    pad = k - 1 - p
    kern = jnp.flip(w, (2, 3)).transpose(1, 0, 2, 3)   # (Cout, Cin, k, k)
    return jax.lax.conv_general_dilated(
        x, kern, window_strides=(1, 1), padding=[(pad, pad), (pad, pad)],
        lhs_dilation=(s, s), dimension_numbers=("NCHW", "OIHW", "NCHW"))


def _ref_bn_lrelu(x, g, b):
    mean = x.mean(axis=(0, 2, 3), keepdims=True)
    var = ((x - mean) ** 2).mean(axis=(0, 2, 3), keepdims=True)
    xn = (x - mean) * jax.lax.rsqrt(var + BN_EPS)
    xn = xn * g.reshape(1, -1, 1, 1) + b.reshape(1, -1, 1, 1)
    return jnp.where(xn >= 0.0, xn, LRELU_SLOPE * xn)


@jax.jit
def generator_reference(params, text, noise):
    x = _ref_bn_lrelu(_ref_convt(text, params["w_text"], 1, 0),
                      params["g_text"], params["b_text"])
    y = _ref_bn_lrelu(_ref_convt(noise, params["w_noise"], 1, 0),
                      params["g_noise"], params["b_noise"])
    h = jnp.concatenate([x, y], axis=1)
    h = _ref_bn_lrelu(_ref_convt(h, params["w1"], 2, 1), params["g1"], params["b1"])
    h = _ref_bn_lrelu(_ref_convt(h, params["w2"], 2, 1), params["g2"], params["b2"])
    return jnp.tanh(_ref_convt(h, params["w3"], 2, 1))


if __name__ == "__main__":
    B, nc, nz, ngf = 2, 3, 8, 8

    key = jax.random.PRNGKey(0)
    k_params, k_text, k_noise = jax.random.split(key, 3)

    params = init_generator_params(k_params, nc, nz, ngf)
    text = jax.random.normal(k_text, (B, nz, 1, 1), dtype=jnp.float32)
    noise = jax.random.normal(k_noise, (B, nz, 1, 1), dtype=jnp.float32)

    out = jax.block_until_ready(generator_forward(params, text, noise))
    ref = jax.block_until_ready(generator_reference(params, text, noise))

    assert out.shape == (B, nc, 28, 28), out.shape
    assert bool(jnp.all(jnp.isfinite(out)))
    assert bool(jnp.all(jnp.abs(out) <= 1.0 + 1e-6))       # tanh range
    err = float(jnp.max(jnp.abs(out - ref)))
    assert err < 5e-2, f"max abs diff vs reference = {err}"  # bf16 MXU operands
    print("KERNEL_OK")
</pallas_src>

<mosaic_0001>
module attributes {stable_mosaic.version = 11 : i64} {
  func.func @_generator_kernel(%arg0: i32, %arg1: memref<2x16xf32, #tpu.memory_space<vmem>>, %arg2: memref<4x16x128xbf16, #tpu.memory_space<vmem>>, %arg3: memref<4x8x2xf32, #tpu.memory_space<vmem>>, %arg4: memref<128x32xf32, #tpu.memory_space<vmem>>, %arg5: memref<2x32xf32, #tpu.memory_space<vmem>>, %arg6: memref<3x128x112xbf16, #tpu.memory_space<vmem>>, %arg7: memref<3x14x8xf32, #tpu.memory_space<vmem>>, %arg8: memref<112x16xf32, #tpu.memory_space<vmem>>, %arg9: memref<2x16xf32, #tpu.memory_space<vmem>>, %arg10: memref<4x112x112xbf16, #tpu.memory_space<vmem>>, %arg11: memref<4x28x14xf32, #tpu.memory_space<vmem>>, %arg12: memref<112x8xf32, #tpu.memory_space<vmem>>, %arg13: memref<2x8xf32, #tpu.memory_space<vmem>>, %arg14: memref<4x112x84xbf16, #tpu.memory_space<vmem>>, %arg15: memref<4x56x28xf32, #tpu.memory_space<vmem>>, %arg16: memref<56x84xf32, #tpu.memory_space<vmem>>) attributes {dimension_semantics = [#tpu.dimension_semantics<arbitrary>], iteration_bounds = array<i64: 1>, scalar_prefetch = 0 : i64, scratch_operands = 0 : i64, tpu.core_type = #tpu.core_type<tc>, window_params = [{pipeline_mode = #tpu.pipeline_mode<synchronous>, transform_indices = @transform_0, window_bounds = array<i64: 2, 16>}, {pipeline_mode = #tpu.pipeline_mode<synchronous>, transform_indices = @transform_1, window_bounds = array<i64: 4, 16, 128>}, {pipeline_mode = #tpu.pipeline_mode<synchronous>, transform_indices = @transform_2, window_bounds = array<i64: 4, 8, 2>}, {pipeline_mode = #tpu.pipeline_mode<synchronous>, transform_indices = @transform_3, window_bounds = array<i64: 128, 32>}, {pipeline_mode = #tpu.pipeline_mode<synchronous>, transform_indices = @transform_4, window_bounds = array<i64: 2, 32>}, {pipeline_mode = #tpu.pipeline_mode<synchronous>, transform_indices = @transform_5, window_bounds = array<i64: 3, 128, 112>}, {pipeline_mode = #tpu.pipeline_mode<synchronous>, transform_indices = @transform_6, window_bounds = array<i64: 3, 14, 8>}, {pipeline_mode = #tpu.pipeline_mode<synchronous>, transform_indices = @transform_7, window_bounds = array<i64: 112, 16>}, {pipeline_mode = #tpu.pipeline_mode<synchronous>, transform_indices = @transform_8, window_bounds = array<i64: 2, 16>}, {pipeline_mode = #tpu.pipeline_mode<synchronous>, transform_indices = @transform_9, window_bounds = array<i64: 4, 112, 112>}, {pipeline_mode = #tpu.pipeline_mode<synchronous>, transform_indices = @transform_10, window_bounds = array<i64: 4, 28, 14>}, {pipeline_mode = #tpu.pipeline_mode<synchronous>, transform_indices = @transform_11, window_bounds = array<i64: 112, 8>}, {pipeline_mode = #tpu.pipeline_mode<synchronous>, transform_indices = @transform_12, window_bounds = array<i64: 2, 8>}, {pipeline_mode = #tpu.pipeline_mode<synchronous>, transform_indices = @transform_13, window_bounds = array<i64: 4, 112, 84>}, {pipeline_mode = #tpu.pipeline_mode<synchronous>, transform_indices = @transform_14, window_bounds = array<i64: 4, 56, 28>}, {pipeline_mode = #tpu.pipeline_mode<synchronous>, transform_indices = @transform_15, window_bounds = array<i64: 56, 84>}]} {
    %c0 = arith.constant 0 : index
    %c0_0 = arith.constant 0 : index
    %0 = vector.load %arg1[%c0, %c0_0] : memref<2x16xf32, #tpu.memory_space<vmem>>, vector<2x16xf32>
    %1 = arith.truncf %0 : vector<2x16xf32> to vector<2x16xbf16>
    %cst = arith.constant 0.000000e+00 : f32
    %2 = vector.broadcast %cst : f32 to vector<8x128xf32>
    %c0_1 = arith.constant 0 : index
    %c0_2 = arith.constant 0 : index
    %c0_3 = arith.constant 0 : index
    %3 = vector.load %arg2[%c0_1, %c0_2, %c0_3] : memref<4x16x128xbf16, #tpu.memory_space<vmem>>, vector<1x16x128xbf16>
    %4 = vector.shape_cast %3 : vector<1x16x128xbf16> to vector<16x128xbf16>
    %cst_4 = arith.constant dense<0.000000e+00> : vector<2x128xf32>
    %5 = tpu.matmul %1, %4, %cst_4 {dimension_numbers = #tpu.dot_dimension_numbers<[1], [0], [0], [1], [0, 0, 1, 1], [], []>} : vector<2x16xbf16>, vector<16x128xbf16>, vector<2x128xf32> -> vector<2x128xf32>
    %c0_5 = arith.constant 0 : index
    %c0_6 = arith.constant 0 : index
    %c0_7 = arith.constant 0 : index
    %6 = vector.load %arg3[%c0_5, %c0_6, %c0_7] : memref<4x8x2xf32, #tpu.memory_space<vmem>>, vector<1x8x2xf32>
    %7 = vector.shape_cast %6 : vector<1x8x2xf32> to vector<8x2xf32>
    %cst_8 = arith.constant dense<0.000000e+00> : vector<8x128xf32>
    %8 = tpu.matmul %7, %5, %cst_8 {dimension_numbers = #tpu.dot_dimension_numbers<[1], [0], [0], [1], [0, 0, 1, 1], [], []>} : vector<8x2xf32>, vector<2x128xf32>, vector<8x128xf32> -> vector<8x128xf32>
    %9 = arith.addf %2, %8 : vector<8x128xf32>
    %c1 = arith.constant 1 : index
    %c0_9 = arith.constant 0 : index
    %c0_10 = arith.constant 0 : index
    %10 = vector.load %arg2[%c1, %c0_9, %c0_10] : memref<4x16x128xbf16, #tpu.memory_space<vmem>>, vector<1x16x128xbf16>
    %11 = vector.shape_cast %10 : vector<1x16x128xbf16> to vector<16x128xbf16>
    %cst_11 = arith.constant dense<0.000000e+00> : vector<2x128xf32>
    %12 = tpu.matmul %1, %11, %cst_11 {dimension_numbers = #tpu.dot_dimension_numbers<[1], [0], [0], [1], [0, 0, 1, 1], [], []>} : vector<2x16xbf16>, vector<16x128xbf16>, vector<2x128xf32> -> vector<2x128xf32>
    %c1_12 = arith.constant 1 : index
    %c0_13 = arith.constant 0 : index
    %c0_14 = arith.constant 0 : index
    %13 = vector.load %arg3[%c1_12, %c0_13, %c0_14] : memref<4x8x2xf32, #tpu.memory_space<vmem>>, vector<1x8x2xf32>
    %14 = vector.shape_cast %13 : vector<1x8x2xf32> to vector<8x2xf32>
    %cst_15 = arith.constant dense<0.000000e+00> : vector<8x128xf32>
    %15 = tpu.matmul %14, %12, %cst_15 {dimension_numbers = #tpu.dot_dimension_numbers<[1], [0], [0], [1], [0, 0, 1, 1], [], []>} : vector<8x2xf32>, vector<2x128xf32>, vector<8x128xf32> -> vector<8x128xf32>
    %16 = arith.addf %9, %15 : vector<8x128xf32>
    %c2 = arith.constant 2 : index
    %c0_16 = arith.constant 0 : index
    %c0_17 = arith.constant 0 : index
    %17 = vector.load %arg2[%c2, %c0_16, %c0_17] : memref<4x16x128xbf16, #tpu.memory_space<vmem>>, vector<1x16x128xbf16>
    %18 = vector.shape_cast %17 : vector<1x16x128xbf16> to vector<16x128xbf16>
    %cst_18 = arith.constant dense<0.000000e+00> : vector<2x128xf32>
    %19 = tpu.matmul %1, %18, %cst_18 {dimension_numbers = #tpu.dot_dimension_numbers<[1], [0], [0], [1], [0, 0, 1, 1], [], []>} : vector<2x16xbf16>, vector<16x128xbf16>, vector<2x128xf32> -> vector<2x128xf32>
    %c2_19 = arith.constant 2 : index
    %c0_20 = arith.constant 0 : index
    %c0_21 = arith.constant 0 : index
    %20 = vector.load %arg3[%c2_19, %c0_20, %c0_21] : memref<4x8x2xf32, #tpu.memory_space<vmem>>, vector<1x8x2xf32>
    %21 = vector.shape_cast %20 : vector<1x8x2xf32> to vector<8x2xf32>
    %cst_22 = arith.constant dense<0.000000e+00> : vector<8x128xf32>
    %22 = tpu.matmul %21, %19, %cst_22 {dimension_numbers = #tpu.dot_dimension_numbers<[1], [0], [0], [1], [0, 0, 1, 1], [], []>} : vector<8x2xf32>, vector<2x128xf32>, vector<8x128xf32> -> vector<8x128xf32>
    %23 = arith.addf %16, %22 : vector<8x128xf32>
    %c3 = arith.constant 3 : index
    %c0_23 = arith.constant 0 : index
    %c0_24 = arith.constant 0 : index
    %24 = vector.load %arg2[%c3, %c0_23, %c0_24] : memref<4x16x128xbf16, #tpu.memory_space<vmem>>, vector<1x16x128xbf16>
    %25 = vector.shape_cast %24 : vector<1x16x128xbf16> to vector<16x128xbf16>
    %cst_25 = arith.constant dense<0.000000e+00> : vector<2x128xf32>
    %26 = tpu.matmul %1, %25, %cst_25 {dimension_numbers = #tpu.dot_dimension_numbers<[1], [0], [0], [1], [0, 0, 1, 1], [], []>} : vector<2x16xbf16>, vector<16x128xbf16>, vector<2x128xf32> -> vector<2x128xf32>
    %c3_26 = arith.constant 3 : index
    %c0_27 = arith.constant 0 : index
    %c0_28 = arith.constant 0 : index
    %27 = vector.load %arg3[%c3_26, %c0_27, %c0_28] : memref<4x8x2xf32, #tpu.memory_space<vmem>>, vector<1x8x2xf32>
    %28 = vector.shape_cast %27 : vector<1x8x2xf32> to vector<8x2xf32>
    %cst_29 = arith.constant dense<0.000000e+00> : vector<8x128xf32>
    %29 = tpu.matmul %28, %26, %cst_29 {dimension_numbers = #tpu.dot_dimension_numbers<[1], [0], [0], [1], [0, 0, 1, 1], [], []>} : vector<8x2xf32>, vector<2x128xf32>, vector<8x128xf32> -> vector<8x128xf32>
    %30 = arith.addf %23, %29 : vector<8x128xf32>
    %c0_30 = arith.constant 0 : index
    %c0_31 = arith.constant 0 : index
    %31 = vector.load %arg4[%c0_30, %c0_31] : memref<128x32xf32, #tpu.memory_space<vmem>>, vector<128x32xf32>
    %cst_32 = arith.constant dense<0.000000e+00> : vector<128xf32>
    %32 = vector.multi_reduction <add>, %30, %cst_32 [0] : vector<8x128xf32> to vector<128xf32>
    %33 = vector.shape_cast %32 : vector<128xf32> to vector<1x128xf32>
    %34 = arith.mulf %30, %30 : vector<8x128xf32>
    %cst_33 = arith.constant dense<0.000000e+00> : vector<128xf32>
    %35 = vector.multi_reduction <add>, %34, %cst_33 [0] : vector<8x128xf32> to vector<128xf32>
    %36 = vector.shape_cast %35 : vector<128xf32> to vector<1x128xf32>
    %cst_34 = arith.constant dense<0.000000e+00> : vector<1x32xf32>
    %37 = tpu.matmul %33, %31, %cst_34 {dimension_numbers = #tpu.dot_dimension_numbers<[1], [0], [0], [1], [0, 0, 1, 1], [], []>} : vector<1x128xf32>, vector<128x32xf32>, vector<1x32xf32> -> vector<1x32xf32>
    %cst_35 = arith.constant 3.200000e+01 : f32
    %38 = vector.broadcast %cst_35 : f32 to vector<1x32xf32>
    %39 = arith.divf %37, %38 : vector<1x32xf32>
    %cst_36 = arith.constant dense<0.000000e+00> : vector<1x32xf32>
    %40 = tpu.matmul %36, %31, %cst_36 {dimension_numbers = #tpu.dot_dimension_numbers<[1], [0], [0], [1], [0, 0, 1, 1], [], []>} : vector<1x128xf32>, vector<128x32xf32>, vector<1x32xf32> -> vector<1x32xf32>
    %cst_37 = arith.constant 3.200000e+01 : f32
    %41 = vector.broadcast %cst_37 : f32 to vector<1x32xf32>
    %42 = arith.divf %40, %41 : vector<1x32xf32>
    %43 = arith.mulf %39, %39 : vector<1x32xf32>
    %44 = arith.subf %42, %43 : vector<1x32xf32>
    %cst_38 = arith.constant 0.000000e+00 : f32
    %45 = vector.broadcast %cst_38 : f32 to vector<1x32xf32>
    %46 = arith.maximumf %44, %45 : vector<1x32xf32>
    %c0_39 = arith.constant 0 : index
    %c0_40 = arith.constant 0 : index
    %47 = vector.load %arg5[%c0_39, %c0_40] : memref<2x32xf32, #tpu.memory_space<vmem>>, vector<1x32xf32>
    %c1_41 = arith.constant 1 : index
    %c0_42 = arith.constant 0 : index
    %48 = vector.load %arg5[%c1_41, %c0_42] : memref<2x32xf32, #tpu.memory_space<vmem>>, vector<1x32xf32>
    %cst_43 = arith.constant 9.99999974E-6 : f32
    %49 = vector.broadcast %cst_43 : f32 to vector<1x32xf32>
    %50 = arith.addf %46, %49 : vector<1x32xf32>
    %51 = math.rsqrt %50 : vector<1x32xf32>
    %52 = arith.mulf %47, %51 : vector<1x32xf32>
    %53 = arith.mulf %39, %52 : vector<1x32xf32>
    %54 = arith.subf %48, %53 : vector<1x32xf32>
    %55 = tpu.transpose %31, [1, 0] : vector<128x32xf32> -> vector<32x128xf32>
    %cst_44 = arith.constant dense<0.000000e+00> : vector<1x128xf32>
    %56 = tpu.matmul %52, %55, %cst_44 {dimension_numbers = #tpu.dot_dimension_numbers<[1], [0], [0], [1], [0, 0, 1, 1], [], []>} : vector<1x32xf32>, vector<32x128xf32>, vector<1x128xf32> -> vector<1x128xf32>
    %57 = tpu.transpose %31, [1, 0] : vector<128x32xf32> -> vector<32x128xf32>
    %cst_45 = arith.constant dense<0.000000e+00> : vector<1x128xf32>
    %58 = tpu.matmul %54, %57, %cst_45 {dimension_numbers = #tpu.dot_dimension_numbers<[1], [0], [0], [1], [0, 0, 1, 1], [], []>} : vector<1x32xf32>, vector<32x128xf32>, vector<1x128xf32> -> vector<1x128xf32>
    %59 = vector.broadcast %56 : vector<1x128xf32> to vector<8x128xf32>
    %60 = arith.mulf %30, %59 : vector<8x128xf32>
    %61 = vector.broadcast %58 : vector<1x128xf32> to vector<8x128xf32>
    %62 = arith.addf %60, %61 : vector<8x128xf32>
    %cst_46 = arith.constant 0.000000e+00 : f32
    %63 = vector.broadcast %cst_46 : f32 to vector<8x128xf32>
    %64 = arith.cmpf oge, %62, %63 : vector<8x128xf32>
    %cst_47 = arith.constant 2.000000e-01 : f32
    %65 = vector.broadcast %cst_47 : f32 to vector<8x128xf32>
    %66 = arith.mulf %65, %62 : vector<8x128xf32>
    %67 = arith.select %64, %62, %66 : vector<8x128xi1>, vector<8x128xf32>
    %68 = arith.truncf %67 : vector<8x128xf32> to vector<8x128xbf16>
    %cst_48 = arith.constant 0.000000e+00 : f32
    %69 = vector.broadcast %cst_48 : f32 to vector<14x112xf32>
    %c0_49 = arith.constant 0 : index
    %c0_50 = arith.constant 0 : index
    %c0_51 = arith.constant 0 : index
    %70 = vector.load %arg6[%c0_49, %c0_50, %c0_51] : memref<3x128x112xbf16, #tpu.memory_space<vmem>>, vector<1x128x112xbf16>
    %71 = vector.shape_cast %70 : vector<1x128x112xbf16> to vector<128x112xbf16>
    %cst_52 = arith.constant dense<0.000000e+00> : vector<8x112xf32>
    %72 = tpu.matmul %68, %71, %cst_52 {dimension_numbers = #tpu.dot_dimension_numbers<[1], [0], [0], [1], [0, 0, 1, 1], [], []>} : vector<8x128xbf16>, vector<128x112xbf16>, vector<8x112xf32> -> vector<8x112xf32>
    %c0_53 = arith.constant 0 : index
    %c0_54 = arith.constant 0 : index
    %c0_55 = arith.constant 0 : index
    %73 = vector.load %arg7[%c0_53, %c0_54, %c0_55] : memref<3x14x8xf32, #tpu.memory_space<vmem>>, vector<1x14x8xf32>
    %74 = vector.shape_cast %73 : vector<1x14x8xf32> to vector<14x8xf32>
    %cst_56 = arith.constant dense<0.000000e+00> : vector<14x112xf32>
    %75 = tpu.matmul %74, %72, %cst_56 {dimension_numbers = #tpu.dot_dimension_numbers<[1], [0], [0], [1], [0, 0, 1, 1], [], []>} : vector<14x8xf32>, vector<8x112xf32>, vector<14x112xf32> -> vector<14x112xf32>
    %76 = arith.addf %69, %75 : vector<14x112xf32>
    %c1_57 = arith.constant 1 : index
    %c0_58 = arith.constant 0 : index
    %c0_59 = arith.constant 0 : index
    %77 = vector.load %arg6[%c1_57, %c0_58, %c0_59] : memref<3x128x112xbf16, #tpu.memory_space<vmem>>, vector<1x128x112xbf16>
    %78 = vector.shape_cast %77 : vector<1x128x112xbf16> to vector<128x112xbf16>
    %cst_60 = arith.constant dense<0.000000e+00> : vector<8x112xf32>
    %79 = tpu.matmul %68, %78, %cst_60 {dimension_numbers = #tpu.dot_dimension_numbers<[1], [0], [0], [1], [0, 0, 1, 1], [], []>} : vector<8x128xbf16>, vector<128x112xbf16>, vector<8x112xf32> -> vector<8x112xf32>
    %c1_61 = arith.constant 1 : index
    %c0_62 = arith.constant 0 : index
    %c0_63 = arith.constant 0 : index
    %80 = vector.load %arg7[%c1_61, %c0_62, %c0_63] : memref<3x14x8xf32, #tpu.memory_space<vmem>>, vector<1x14x8xf32>
    %81 = vector.shape_cast %80 : vector<1x14x8xf32> to vector<14x8xf32>
    %cst_64 = arith.constant dense<0.000000e+00> : vector<14x112xf32>
    %82 = tpu.matmul %81, %79, %cst_64 {dimension_numbers = #tpu.dot_dimension_numbers<[1], [0], [0], [1], [0, 0, 1, 1], [], []>} : vector<14x8xf32>, vector<8x112xf32>, vector<14x112xf32> -> vector<14x112xf32>
    %83 = arith.addf %76, %82 : vector<14x112xf32>
    %c2_65 = arith.constant 2 : index
    %c0_66 = arith.constant 0 : index
    %c0_67 = arith.constant 0 : index
    %84 = vector.load %arg6[%c2_65, %c0_66, %c0_67] : memref<3x128x112xbf16, #tpu.memory_space<vmem>>, vector<1x128x112xbf16>
    %85 = vector.shape_cast %84 : vector<1x128x112xbf16> to vector<128x112xbf16>
    %cst_68 = arith.constant dense<0.000000e+00> : vector<8x112xf32>
    %86 = tpu.matmul %68, %85, %cst_68 {dimension_numbers = #tpu.dot_dimension_numbers<[1], [0], [0], [1], [0, 0, 1, 1], [], []>} : vector<8x128xbf16>, vector<128x112xbf16>, vector<8x112xf32> -> vector<8x112xf32>
    %c2_69 = arith.constant 2 : index
    %c0_70 = arith.constant 0 : index
    %c0_71 = arith.constant 0 : index
    %87 = vector.load %arg7[%c2_69, %c0_70, %c0_71] : memref<3x14x8xf32, #tpu.memory_space<vmem>>, vector<1x14x8xf32>
    %88 = vector.shape_cast %87 : vector<1x14x8xf32> to vector<14x8xf32>
    %cst_72 = arith.constant dense<0.000000e+00> : vector<14x112xf32>
    %89 = tpu.matmul %88, %86, %cst_72 {dimension_numbers = #tpu.dot_dimension_numbers<[1], [0], [0], [1], [0, 0, 1, 1], [], []>} : vector<14x8xf32>, vector<8x112xf32>, vector<14x112xf32> -> vector<14x112xf32>
    %90 = arith.addf %83, %89 : vector<14x112xf32>
    %c0_73 = arith.constant 0 : index
    %c0_74 = arith.constant 0 : index
    %91 = vector.load %arg8[%c0_73, %c0_74] : memref<112x16xf32, #tpu.memory_space<vmem>>, vector<112x16xf32>
    %cst_75 = arith.constant dense<0.000000e+00> : vector<112xf32>
    %92 = vector.multi_reduction <add>, %90, %cst_75 [0] : vector<14x112xf32> to vector<112xf32>
    %93 = vector.shape_cast %92 : vector<112xf32> to vector<1x112xf32>
    %94 = arith.mulf %90, %90 : vector<14x112xf32>
    %cst_76 = arith.constant dense<0.000000e+00> : vector<112xf32>
    %95 = vector.multi_reduction <add>, %94, %cst_76 [0] : vector<14x112xf32> to vector<112xf32>
    %96 = vector.shape_cast %95 : vector<112xf32> to vector<1x112xf32>
    %cst_77 = arith.constant dense<0.000000e+00> : vector<1x16xf32>
    %97 = tpu.matmul %93, %91, %cst_77 {dimension_numbers = #tpu.dot_dimension_numbers<[1], [0], [0], [1], [0, 0, 1, 1], [], []>} : vector<1x112xf32>, vector<112x16xf32>, vector<1x16xf32> -> vector<1x16xf32>
    %cst_78 = arith.constant 9.800000e+01 : f32
    %98 = vector.broadcast %cst_78 : f32 to vector<1x16xf32>
    %99 = arith.divf %97, %98 : vector<1x16xf32>
    %cst_79 = arith.constant dense<0.000000e+00> : vector<1x16xf32>
    %100 = tpu.matmul %96, %91, %cst_79 {dimension_numbers = #tpu.dot_dimension_numbers<[1], [0], [0], [1], [0, 0, 1, 1], [], []>} : vector<1x112xf32>, vector<112x16xf32>, vector<1x16xf32> -> vector<1x16xf32>
    %cst_80 = arith.constant 9.800000e+01 : f32
    %101 = vector.broadcast %cst_80 : f32 to vector<1x16xf32>
    %102 = arith.divf %100, %101 : vector<1x16xf32>
    %103 = arith.mulf %99, %99 : vector<1x16xf32>
    %104 = arith.subf %102, %103 : vector<1x16xf32>
    %cst_81 = arith.constant 0.000000e+00 : f32
    %105 = vector.broadcast %cst_81 : f32 to vector<1x16xf32>
    %106 = arith.maximumf %104, %105 : vector<1x16xf32>
    %c0_82 = arith.constant 0 : index
    %c0_83 = arith.constant 0 : index
    %107 = vector.load %arg9[%c0_82, %c0_83] : memref<2x16xf32, #tpu.memory_space<vmem>>, vector<1x16xf32>
    %c1_84 = arith.constant 1 : index
    %c0_85 = arith.constant 0 : index
    %108 = vector.load %arg9[%c1_84, %c0_85] : memref<2x16xf32, #tpu.memory_space<vmem>>, vector<1x16xf32>
    %cst_86 = arith.constant 9.99999974E-6 : f32
    %109 = vector.broadcast %cst_86 : f32 to vector<1x16xf32>
    %110 = arith.addf %106, %109 : vector<1x16xf32>
    %111 = math.rsqrt %110 : vector<1x16xf32>
    %112 = arith.mulf %107, %111 : vector<1x16xf32>
    %113 = arith.mulf %99, %112 : vector<1x16xf32>
    %114 = arith.subf %108, %113 : vector<1x16xf32>
    %115 = tpu.transpose %91, [1, 0] : vector<112x16xf32> -> vector<16x112xf32>
    %cst_87 = arith.constant dense<0.000000e+00> : vector<1x112xf32>
    %116 = tpu.matmul %112, %115, %cst_87 {dimension_numbers = #tpu.dot_dimension_numbers<[1], [0], [0], [1], [0, 0, 1, 1], [], []>} : vector<1x16xf32>, vector<16x112xf32>, vector<1x112xf32> -> vector<1x112xf32>
    %117 = tpu.transpose %91, [1, 0] : vector<112x16xf32> -> vector<16x112xf32>
    %cst_88 = arith.constant dense<0.000000e+00> : vector<1x112xf32>
    %118 = tpu.matmul %114, %117, %cst_88 {dimension_numbers = #tpu.dot_dimension_numbers<[1], [0], [0], [1], [0, 0, 1, 1], [], []>} : vector<1x16xf32>, vector<16x112xf32>, vector<1x112xf32> -> vector<1x112xf32>
    %119 = vector.broadcast %116 : vector<1x112xf32> to vector<14x112xf32>
    %120 = arith.mulf %90, %119 : vector<14x112xf32>
    %121 = vector.broadcast %118 : vector<1x112xf32> to vector<14x112xf32>
    %122 = arith.addf %120, %121 : vector<14x112xf32>
    %cst_89 = arith.constant 0.000000e+00 : f32
    %123 = vector.broadcast %cst_89 : f32 to vector<14x112xf32>
    %124 = arith.cmpf oge, %122, %123 : vector<14x112xf32>
    %cst_90 = arith.constant 2.000000e-01 : f32
    %125 = vector.broadcast %cst_90 : f32 to vector<14x112xf32>
    %126 = arith.mulf %125, %122 : vector<14x112xf32>
    %127 = arith.select %124, %122, %126 : vector<14x112xi1>, vector<14x112xf32>
    %128 = arith.truncf %127 : vector<14x112xf32> to vector<14x112xbf16>
    %cst_91 = arith.constant 0.000000e+00 : f32
    %129 = vector.broadcast %cst_91 : f32 to vector<28x112xf32>
    %c0_92 = arith.constant 0 : index
    %c0_93 = arith.constant 0 : index
    %c0_94 = arith.constant 0 : index
    %130 = vector.load %arg10[%c0_92, %c0_93, %c0_94] : memref<4x112x112xbf16, #tpu.memory_space<vmem>>, vector<1x112x112xbf16>
    %131 = vector.shape_cast %130 : vector<1x112x112xbf16> to vector<112x112xbf16>
    %cst_95 = arith.constant dense<0.000000e+00> : vector<14x112xf32>
    %132 = tpu.matmul %128, %131, %cst_95 {dimension_numbers = #tpu.dot_dimension_numbers<[1], [0], [0], [1], [0, 0, 1, 1], [], []>} : vector<14x112xbf16>, vector<112x112xbf16>, vector<14x112xf32> -> vector<14x112xf32>
    %c0_96 = arith.constant 0 : index
    %c0_97 = arith.constant 0 : index
    %c0_98 = arith.constant 0 : index
    %133 = vector.load %arg11[%c0_96, %c0_97, %c0_98] : memref<4x28x14xf32, #tpu.memory_space<vmem>>, vector<1x28x14xf32>
    %134 = vector.shape_cast %133 : vector<1x28x14xf32> to vector<28x14xf32>
    %cst_99 = arith.constant dense<0.000000e+00> : vector<28x112xf32>
    %135 = tpu.matmul %134, %132, %cst_99 {dimension_numbers = #tpu.dot_dimension_numbers<[1], [0], [0], [1], [0, 0, 1, 1], [], []>} : vector<28x14xf32>, vector<14x112xf32>, vector<28x112xf32> -> vector<28x112xf32>
    %136 = arith.addf %129, %135 : vector<28x112xf32>
    %c1_100 = arith.constant 1 : index
    %c0_101 = arith.constant 0 : index
    %c0_102 = arith.constant 0 : index
    %137 = vector.load %arg10[%c1_100, %c0_101, %c0_102] : memref<4x112x112xbf16, #tpu.memory_space<vmem>>, vector<1x112x112xbf16>
    %138 = vector.shape_cast %137 : vector<1x112x112xbf16> to vector<112x112xbf16>
    %cst_103 = arith.constant dense<0.000000e+00> : vector<14x112xf32>
    %139 = tpu.matmul %128, %138, %cst_103 {dimension_numbers = #tpu.dot_dimension_numbers<[1], [0], [0], [1], [0, 0, 1, 1], [], []>} : vector<14x112xbf16>, vector<112x112xbf16>, vector<14x112xf32> -> vector<14x112xf32>
    %c1_104 = arith.constant 1 : index
    %c0_105 = arith.constant 0 : index
    %c0_106 = arith.constant 0 : index
    %140 = vector.load %arg11[%c1_104, %c0_105, %c0_106] : memref<4x28x14xf32, #tpu.memory_space<vmem>>, vector<1x28x14xf32>
    %141 = vector.shape_cast %140 : vector<1x28x14xf32> to vector<28x14xf32>
    %cst_107 = arith.constant dense<0.000000e+00> : vector<28x112xf32>
    %142 = tpu.matmul %141, %139, %cst_107 {dimension_numbers = #tpu.dot_dimension_numbers<[1], [0], [0], [1], [0, 0, 1, 1], [], []>} : vector<28x14xf32>, vector<14x112xf32>, vector<28x112xf32> -> vector<28x112xf32>
    %143 = arith.addf %136, %142 : vector<28x112xf32>
    %c2_108 = arith.constant 2 : index
    %c0_109 = arith.constant 0 : index
    %c0_110 = arith.constant 0 : index
    %144 = vector.load %arg10[%c2_108, %c0_109, %c0_110] : memref<4x112x112xbf16, #tpu.memory_space<vmem>>, vector<1x112x112xbf16>
    %145 = vector.shape_cast %144 : vector<1x112x112xbf16> to vector<112x112xbf16>
    %cst_111 = arith.constant dense<0.000000e+00> : vector<14x112xf32>
    %146 = tpu.matmul %128, %145, %cst_111 {dimension_numbers = #tpu.dot_dimension_numbers<[1], [0], [0], [1], [0, 0, 1, 1], [], []>} : vector<14x112xbf16>, vector<112x112xbf16>, vector<14x112xf32> -> vector<14x112xf32>
    %c2_112 = arith.constant 2 : index
    %c0_113 = arith.constant 0 : index
    %c0_114 = arith.constant 0 : index
    %147 = vector.load %arg11[%c2_112, %c0_113, %c0_114] : memref<4x28x14xf32, #tpu.memory_space<vmem>>, vector<1x28x14xf32>
    %148 = vector.shape_cast %147 : vector<1x28x14xf32> to vector<28x14xf32>
    %cst_115 = arith.constant dense<0.000000e+00> : vector<28x112xf32>
    %149 = tpu.matmul %148, %146, %cst_115 {dimension_numbers = #tpu.dot_dimension_numbers<[1], [0], [0], [1], [0, 0, 1, 1], [], []>} : vector<28x14xf32>, vector<14x112xf32>, vector<28x112xf32> -> vector<28x112xf32>
    %150 = arith.addf %143, %149 : vector<28x112xf32>
    %c3_116 = arith.constant 3 : index
    %c0_117 = arith.constant 0 : index
    %c0_118 = arith.constant 0 : index
    %151 = vector.load %arg10[%c3_116, %c0_117, %c0_118] : memref<4x112x112xbf16, #tpu.memory_space<vmem>>, vector<1x112x112xbf16>
    %152 = vector.shape_cast %151 : vector<1x112x112xbf16> to vector<112x112xbf16>
    %cst_119 = arith.constant dense<0.000000e+00> : vector<14x112xf32>
    %153 = tpu.matmul %128, %152, %cst_119 {dimension_numbers = #tpu.dot_dimension_numbers<[1], [0], [0], [1], [0, 0, 1, 1], [], []>} : vector<14x112xbf16>, vector<112x112xbf16>, vector<14x112xf32> -> vector<14x112xf32>
    %c3_120 = arith.constant 3 : index
    %c0_121 = arith.constant 0 : index
    %c0_122 = arith.constant 0 : index
    %154 = vector.load %arg11[%c3_120, %c0_121, %c0_122] : memref<4x28x14xf32, #tpu.memory_space<vmem>>, vector<1x28x14xf32>
    %155 = vector.shape_cast %154 : vector<1x28x14xf32> to vector<28x14xf32>
    %cst_123 = arith.constant dense<0.000000e+00> : vector<28x112xf32>
    %156 = tpu.matmul %155, %153, %cst_123 {dimension_numbers = #tpu.dot_dimension_numbers<[1], [0], [0], [1], [0, 0, 1, 1], [], []>} : vector<28x14xf32>, vector<14x112xf32>, vector<28x112xf32> -> vector<28x112xf32>
    %157 = arith.addf %150, %156 : vector<28x112xf32>
    %c0_124 = arith.constant 0 : index
    %c0_125 = arith.constant 0 : index
    %158 = vector.load %arg12[%c0_124, %c0_125] : memref<112x8xf32, #tpu.memory_space<vmem>>, vector<112x8xf32>
    %cst_126 = arith.constant dense<0.000000e+00> : vector<112xf32>
    %159 = vector.multi_reduction <add>, %157, %cst_126 [0] : vector<28x112xf32> to vector<112xf32>
    %160 = vector.shape_cast %159 : vector<112xf32> to vector<1x112xf32>
    %161 = arith.mulf %157, %157 : vector<28x112xf32>
    %cst_127 = arith.constant dense<0.000000e+00> : vector<112xf32>
    %162 = vector.multi_reduction <add>, %161, %cst_127 [0] : vector<28x112xf32> to vector<112xf32>
    %163 = vector.shape_cast %162 : vector<112xf32> to vector<1x112xf32>
    %cst_128 = arith.constant dense<0.000000e+00> : vector<1x8xf32>
    %164 = tpu.matmul %160, %158, %cst_128 {dimension_numbers = #tpu.dot_dimension_numbers<[1], [0], [0], [1], [0, 0, 1, 1], [], []>} : vector<1x112xf32>, vector<112x8xf32>, vector<1x8xf32> -> vector<1x8xf32>
    %cst_129 = arith.constant 3.920000e+02 : f32
    %165 = vector.broadcast %cst_129 : f32 to vector<1x8xf32>
    %166 = arith.divf %164, %165 : vector<1x8xf32>
    %cst_130 = arith.constant dense<0.000000e+00> : vector<1x8xf32>
    %167 = tpu.matmul %163, %158, %cst_130 {dimension_numbers = #tpu.dot_dimension_numbers<[1], [0], [0], [1], [0, 0, 1, 1], [], []>} : vector<1x112xf32>, vector<112x8xf32>, vector<1x8xf32> -> vector<1x8xf32>
    %cst_131 = arith.constant 3.920000e+02 : f32
    %168 = vector.broadcast %cst_131 : f32 to vector<1x8xf32>
    %169 = arith.divf %167, %168 : vector<1x8xf32>
    %170 = arith.mulf %166, %166 : vector<1x8xf32>
    %171 = arith.subf %169, %170 : vector<1x8xf32>
    %cst_132 = arith.constant 0.000000e+00 : f32
    %172 = vector.broadcast %cst_132 : f32 to vector<1x8xf32>
    %173 = arith.maximumf %171, %172 : vector<1x8xf32>
    %c0_133 = arith.constant 0 : index
    %c0_134 = arith.constant 0 : index
    %174 = vector.load %arg13[%c0_133, %c0_134] : memref<2x8xf32, #tpu.memory_space<vmem>>, vector<1x8xf32>
    %c1_135 = arith.constant 1 : index
    %c0_136 = arith.constant 0 : index
    %175 = vector.load %arg13[%c1_135, %c0_136] : memref<2x8xf32, #tpu.memory_space<vmem>>, vector<1x8xf32>
    %cst_137 = arith.constant 9.99999974E-6 : f32
    %176 = vector.broadcast %cst_137 : f32 to vector<1x8xf32>
    %177 = arith.addf %173, %176 : vector<1x8xf32>
    %178 = math.rsqrt %177 : vector<1x8xf32>
    %179 = arith.mulf %174, %178 : vector<1x8xf32>
    %180 = arith.mulf %166, %179 : vector<1x8xf32>
    %181 = arith.subf %175, %180 : vector<1x8xf32>
    %182 = tpu.transpose %158, [1, 0] : vector<112x8xf32> -> vector<8x112xf32>
    %cst_138 = arith.constant dense<0.000000e+00> : vector<1x112xf32>
    %183 = tpu.matmul %179, %182, %cst_138 {dimension_numbers = #tpu.dot_dimension_numbers<[1], [0], [0], [1], [0, 0, 1, 1], [], []>} : vector<1x8xf32>, vector<8x112xf32>, vector<1x112xf32> -> vector<1x112xf32>
    %184 = tpu.transpose %158, [1, 0] : vector<112x8xf32> -> vector<8x112xf32>
    %cst_139 = arith.constant dense<0.000000e+00> : vector<1x112xf32>
    %185 = tpu.matmul %181, %184, %cst_139 {dimension_numbers = #tpu.dot_dimension_numbers<[1], [0], [0], [1], [0, 0, 1, 1], [], []>} : vector<1x8xf32>, vector<8x112xf32>, vector<1x112xf32> -> vector<1x112xf32>
    %186 = vector.broadcast %183 : vector<1x112xf32> to vector<28x112xf32>
    %187 = arith.mulf %157, %186 : vector<28x112xf32>
    %188 = vector.broadcast %185 : vector<1x112xf32> to vector<28x112xf32>
    %189 = arith.addf %187, %188 : vector<28x112xf32>
    %cst_140 = arith.constant 0.000000e+00 : f32
    %190 = vector.broadcast %cst_140 : f32 to vector<28x112xf32>
    %191 = arith.cmpf oge, %189, %190 : vector<28x112xf32>
    %cst_141 = arith.constant 2.000000e-01 : f32
    %192 = vector.broadcast %cst_141 : f32 to vector<28x112xf32>
    %193 = arith.mulf %192, %189 : vector<28x112xf32>
    %194 = arith.select %191, %189, %193 : vector<28x112xi1>, vector<28x112xf32>
    %195 = arith.truncf %194 : vector<28x112xf32> to vector<28x112xbf16>
    %cst_142 = arith.constant 0.000000e+00 : f32
    %196 = vector.broadcast %cst_142 : f32 to vector<56x84xf32>
    %c0_143 = arith.constant 0 : index
    %c0_144 = arith.constant 0 : index
    %c0_145 = arith.constant 0 : index
    %197 = vector.load %arg14[%c0_143, %c0_144, %c0_145] : memref<4x112x84xbf16, #tpu.memory_space<vmem>>, vector<1x112x84xbf16>
    %198 = vector.shape_cast %197 : vector<1x112x84xbf16> to vector<112x84xbf16>
    %cst_146 = arith.constant dense<0.000000e+00> : vector<28x84xf32>
    %199 = tpu.matmul %195, %198, %cst_146 {dimension_numbers = #tpu.dot_dimension_numbers<[1], [0], [0], [1], [0, 0, 1, 1], [], []>} : vector<28x112xbf16>, vector<112x84xbf16>, vector<28x84xf32> -> vector<28x84xf32>
    %c0_147 = arith.constant 0 : index
    %c0_148 = arith.constant 0 : index
    %c0_149 = arith.constant 0 : index
    %200 = vector.load %arg15[%c0_147, %c0_148, %c0_149] : memref<4x56x28xf32, #tpu.memory_space<vmem>>, vector<1x56x28xf32>
    %201 = vector.shape_cast %200 : vector<1x56x28xf32> to vector<56x28xf32>
    %cst_150 = arith.constant dense<0.000000e+00> : vector<56x84xf32>
    %202 = tpu.matmul %201, %199, %cst_150 {dimension_numbers = #tpu.dot_dimension_numbers<[1], [0], [0], [1], [0, 0, 1, 1], [], []>} : vector<56x28xf32>, vector<28x84xf32>, vector<56x84xf32> -> vector<56x84xf32>
    %203 = arith.addf %196, %202 : vector<56x84xf32>
    %c1_151 = arith.constant 1 : index
    %c0_152 = arith.constant 0 : index
    %c0_153 = arith.constant 0 : index
    %204 = vector.load %arg14[%c1_151, %c0_152, %c0_153] : memref<4x112x84xbf16, #tpu.memory_space<vmem>>, vector<1x112x84xbf16>
    %205 = vector.shape_cast %204 : vector<1x112x84xbf16> to vector<112x84xbf16>
    %cst_154 = arith.constant dense<0.000000e+00> : vector<28x84xf32>
    %206 = tpu.matmul %195, %205, %cst_154 {dimension_numbers = #tpu.dot_dimension_numbers<[1], [0], [0], [1], [0, 0, 1, 1], [], []>} : vector<28x112xbf16>, vector<112x84xbf16>, vector<28x84xf32> -> vector<28x84xf32>
    %c1_155 = arith.constant 1 : index
    %c0_156 = arith.constant 0 : index
    %c0_157 = arith.constant 0 : index
    %207 = vector.load %arg15[%c1_155, %c0_156, %c0_157] : memref<4x56x28xf32, #tpu.memory_space<vmem>>, vector<1x56x28xf32>
    %208 = vector.shape_cast %207 : vector<1x56x28xf32> to vector<56x28xf32>
    %cst_158 = arith.constant dense<0.000000e+00> : vector<56x84xf32>
    %209 = tpu.matmul %208, %206, %cst_158 {dimension_numbers = #tpu.dot_dimension_numbers<[1], [0], [0], [1], [0, 0, 1, 1], [], []>} : vector<56x28xf32>, vector<28x84xf32>, vector<56x84xf32> -> vector<56x84xf32>
    %210 = arith.addf %203, %209 : vector<56x84xf32>
    %c2_159 = arith.constant 2 : index
    %c0_160 = arith.constant 0 : index
    %c0_161 = arith.constant 0 : index
    %211 = vector.load %arg14[%c2_159, %c0_160, %c0_161] : memref<4x112x84xbf16, #tpu.memory_space<vmem>>, vector<1x112x84xbf16>
    %212 = vector.shape_cast %211 : vector<1x112x84xbf16> to vector<112x84xbf16>
    %cst_162 = arith.constant dense<0.000000e+00> : vector<28x84xf32>
    %213 = tpu.matmul %195, %212, %cst_162 {dimension_numbers = #tpu.dot_dimension_numbers<[1], [0], [0], [1], [0, 0, 1, 1], [], []>} : vector<28x112xbf16>, vector<112x84xbf16>, vector<28x84xf32> -> vector<28x84xf32>
    %c2_163 = arith.constant 2 : index
    %c0_164 = arith.constant 0 : index
    %c0_165 = arith.constant 0 : index
    %214 = vector.load %arg15[%c2_163, %c0_164, %c0_165] : memref<4x56x28xf32, #tpu.memory_space<vmem>>, vector<1x56x28xf32>
    %215 = vector.shape_cast %214 : vector<1x56x28xf32> to vector<56x28xf32>
    %cst_166 = arith.constant dense<0.000000e+00> : vector<56x84xf32>
    %216 = tpu.matmul %215, %213, %cst_166 {dimension_numbers = #tpu.dot_dimension_numbers<[1], [0], [0], [1], [0, 0, 1, 1], [], []>} : vector<56x28xf32>, vector<28x84xf32>, vector<56x84xf32> -> vector<56x84xf32>
    %217 = arith.addf %210, %216 : vector<56x84xf32>
    %c3_167 = arith.constant 3 : index
    %c0_168 = arith.constant 0 : index
    %c0_169 = arith.constant 0 : index
    %218 = vector.load %arg14[%c3_167, %c0_168, %c0_169] : memref<4x112x84xbf16, #tpu.memory_space<vmem>>, vector<1x112x84xbf16>
    %219 = vector.shape_cast %218 : vector<1x112x84xbf16> to vector<112x84xbf16>
    %cst_170 = arith.constant dense<0.000000e+00> : vector<28x84xf32>
    %220 = tpu.matmul %195, %219, %cst_170 {dimension_numbers = #tpu.dot_dimension_numbers<[1], [0], [0], [1], [0, 0, 1, 1], [], []>} : vector<28x112xbf16>, vector<112x84xbf16>, vector<28x84xf32> -> vector<28x84xf32>
    %c3_171 = arith.constant 3 : index
    %c0_172 = arith.constant 0 : index
    %c0_173 = arith.constant 0 : index
    %221 = vector.load %arg15[%c3_171, %c0_172, %c0_173] : memref<4x56x28xf32, #tpu.memory_space<vmem>>, vector<1x56x28xf32>
    %222 = vector.shape_cast %221 : vector<1x56x28xf32> to vector<56x28xf32>
    %cst_174 = arith.constant dense<0.000000e+00> : vector<56x84xf32>
    %223 = tpu.matmul %222, %220, %cst_174 {dimension_numbers = #tpu.dot_dimension_numbers<[1], [0], [0], [1], [0, 0, 1, 1], [], []>} : vector<56x28xf32>, vector<28x84xf32>, vector<56x84xf32> -> vector<56x84xf32>
    %224 = arith.addf %217, %223 : vector<56x84xf32>
    %225 = math.tanh %224 : vector<56x84xf32>
    %c0_175 = arith.constant 0 : index
    %c0_176 = arith.constant 0 : index
    %226 = vector.load %arg16[%c0_175, %c0_176] : memref<56x84xf32, #tpu.memory_space<vmem>>, vector<56x84xf32>
    tpu.vector_store %arg16[%c0_175, %c0_176], %225 {strides = array<i32>} : memref<56x84xf32, #tpu.memory_space<vmem>>, vector<56x84xf32>,
    return
  }
  func.func @transform_0(%arg0: i32) -> (i32, i32) {
    %c0_i32 = arith.constant 0 : i32
    %c0_i32_0 = arith.constant 0 : i32
    %c0_i32_1 = arith.constant 0 : i32
    return %c0_i32, %c0_i32_0 : i32, i32
  }
  func.func @transform_1(%arg0: i32) -> (i32, i32, i32) {
    %c0_i32 = arith.constant 0 : i32
    %c0_i32_0 = arith.constant 0 : i32
    %c0_i32_1 = arith.constant 0 : i32
    %c0_i32_2 = arith.constant 0 : i32
    return %c0_i32, %c0_i32_0, %c0_i32_1 : i32, i32, i32
  }
  func.func @transform_2(%arg0: i32) -> (i32, i32, i32) {
    %c0_i32 = arith.constant 0 : i32
    %c0_i32_0 = arith.constant 0 : i32
    %c0_i32_1 = arith.constant 0 : i32
    %c0_i32_2 = arith.constant 0 : i32
    return %c0_i32, %c0_i32_0, %c0_i32_1 : i32, i32, i32
  }
  func.func @transform_3(%arg0: i32) -> (i32, i32) {
    %c0_i32 = arith.constant 0 : i32
    %c0_i32_0 = arith.constant 0 : i32
    %c0_i32_1 = arith.constant 0 : i32
    return %c0_i32, %c0_i32_0 : i32, i32
  }
  func.func @transform_4(%arg0: i32) -> (i32, i32) {
    %c0_i32 = arith.constant 0 : i32
    %c0_i32_0 = arith.constant 0 : i32
    %c0_i32_1 = arith.constant 0 : i32
    return %c0_i32, %c0_i32_0 : i32, i32
  }
  func.func @transform_5(%arg0: i32) -> (i32, i32, i32) {
    %c0_i32 = arith.constant 0 : i32
    %c0_i32_0 = arith.constant 0 : i32
    %c0_i32_1 = arith.constant 0 : i32
    %c0_i32_2 = arith.constant 0 : i32
    return %c0_i32, %c0_i32_0, %c0_i32_1 : i32, i32, i32
  }
  func.func @transform_6(%arg0: i32) -> (i32, i32, i32) {
    %c0_i32 = arith.constant 0 : i32
    %c0_i32_0 = arith.constant 0 : i32
    %c0_i32_1 = arith.constant 0 : i32
    %c0_i32_2 = arith.constant 0 : i32
    return %c0_i32, %c0_i32_0, %c0_i32_1 : i32, i32, i32
  }
  func.func @transform_7(%arg0: i32) -> (i32, i32) {
    %c0_i32 = arith.constant 0 : i32
    %c0_i32_0 = arith.constant 0 : i32
    %c0_i32_1 = arith.constant 0 : i32
    return %c0_i32, %c0_i32_0 : i32, i32
  }
  func.func @transform_8(%arg0: i32) -> (i32, i32) {
    %c0_i32 = arith.constant 0 : i32
    %c0_i32_0 = arith.constant 0 : i32
    %c0_i32_1 = arith.constant 0 : i32
    return %c0_i32, %c0_i32_0 : i32, i32
  }
  func.func @transform_9(%arg0: i32) -> (i32, i32, i32) {
    %c0_i32 = arith.constant 0 : i32
    %c0_i32_0 = arith.constant 0 : i32
    %c0_i32_1 = arith.constant 0 : i32
    %c0_i32_2 = arith.constant 0 : i32
    return %c0_i32, %c0_i32_0, %c0_i32_1 : i32, i32, i32
  }
  func.func @transform_10(%arg0: i32) -> (i32, i32, i32) {
    %c0_i32 = arith.constant 0 : i32
    %c0_i32_0 = arith.constant 0 : i32
    %c0_i32_1 = arith.constant 0 : i32
    %c0_i32_2 = arith.constant 0 : i32
    return %c0_i32, %c0_i32_0, %c0_i32_1 : i32, i32, i32
  }
  func.func @transform_11(%arg0: i32) -> (i32, i32) {
    %c0_i32 = arith.constant 0 : i32
    %c0_i32_0 = arith.constant 0 : i32
    %c0_i32_1 = arith.constant 0 : i32
    return %c0_i32, %c0_i32_0 : i32, i32
  }
  func.func @transform_12(%arg0: i32) -> (i32, i32) {
    %c0_i32 = arith.constant 0 : i32
    %c0_i32_0 = arith.constant 0 : i32
    %c0_i32_1 = arith.constant 0 : i32
    return %c0_i32, %c0_i32_0 : i32, i32
  }
  func.func @transform_13(%arg0: i32) -> (i32, i32, i32) {
    %c0_i32 = arith.constant 0 : i32
    %c0_i32_0 = arith.constant 0 : i32
    %c0_i32_1 = arith.constant 0 : i32
    %c0_i32_2 = arith.constant 0 : i32
    return %c0_i32, %c0_i32_0, %c0_i32_1 : i32, i32, i32
  }
  func.func @transform_14(%arg0: i32) -> (i32, i32, i32) {
    %c0_i32 = arith.constant 0 : i32
    %c0_i32_0 = arith.constant 0 : i32
    %c0_i32_1 = arith.constant 0 : i32
    %c0_i32_2 = arith.constant 0 : i32
    return %c0_i32, %c0_i32_0, %c0_i32_1 : i32, i32, i32
  }
  func.func @transform_15(%arg0: i32) -> (i32, i32) {
    %c0_i32 = arith.constant 0 : i32
    %c0_i32_0 = arith.constant 0 : i32
    %c0_i32_1 = arith.constant 0 : i32
    return %c0_i32, %c0_i32_0 : i32, i32
  }
}

</mosaic_0001>

<llo_original>
// kernel: generator_forward.1
$region0: #{generator_forward.1}
  #allocation0 [shape = 'u32[]', space=smem, size = 0x4, offset = 0x4, fixed_abs, tag = 'smem constant byte address 0x4 - core index']
  #allocation1 [shape = 'u32[72,128]{1,0:T(1,128)}', space=vmem, size = 0x9000, scoped, tag = 'internal scratch']
  %s0 = inlined_call_operand.vmem [shape: f32[2,16], index: 0, kind: input, shape index: {}]
  %s1 = inlined_call_operand.vmem [shape: bf16[4,16,128], index: 1, kind: input, shape index: {}]
  %s2 = inlined_call_operand.vmem [shape: f32[4,8,2], index: 2, kind: input, shape index: {}]
  %s3 = inlined_call_operand.vmem [shape: f32[128,32], index: 3, kind: input, shape index: {}]
  %s4 = inlined_call_operand.vmem [shape: f32[2,32], index: 4, kind: input, shape index: {}]
  %s5 = inlined_call_operand.vmem [shape: bf16[3,128,112], index: 5, kind: input, shape index: {}]
  %s6 = inlined_call_operand.vmem [shape: f32[3,14,8], index: 6, kind: input, shape index: {}]
  %s7 = inlined_call_operand.vmem [shape: f32[112,16], index: 7, kind: input, shape index: {}]
  %s8 = inlined_call_operand.vmem [shape: f32[2,16], index: 8, kind: input, shape index: {}]
  %s9 = inlined_call_operand.vmem [shape: bf16[4,112,112], index: 9, kind: input, shape index: {}]
  %s10 = inlined_call_operand.vmem [shape: f32[4,28,14], index: 10, kind: input, shape index: {}]
  %s11 = inlined_call_operand.vmem [shape: f32[112,8], index: 11, kind: input, shape index: {}]
  %s12 = inlined_call_operand.vmem [shape: f32[2,8], index: 12, kind: input, shape index: {}]
  %s13 = inlined_call_operand.vmem [shape: bf16[4,112,84], index: 13, kind: input, shape index: {}]
  %s14 = inlined_call_operand.vmem [shape: f32[4,56,28], index: 14, kind: input, shape index: {}]
  %s15 = inlined_call_operand.vmem [shape: f32[56,84], index: 15, kind: output, shape index: {}]
  %s16 = sld [smem:[#allocation0]]
  $region70: #{generator_forward.1} parent=0
    _
  %s18 = ssub.s32 1, %s16
  %s19 = scalar_select 0, %s18, %s16
  // Predicated region
  $region2: #{generator_forward.1} parent=0 // pred_check
    _
  $region3: #{generator_forward.1} parent=0 // pred_check_branch
    %21 = sbr.rel (0) target = $region5
  $region4: #{generator_forward.1} parent=0 // pred_region
    _
  $region5: #{generator_forward.1} parent=0 // pred_fallthru
    _
  // Predicated region
  $region6: #{generator_forward.1} parent=0 // pred_check
    _
  $region7: #{generator_forward.1} parent=0 // pred_check_branch
    %23 = sbr.rel (0) target = $region9
  $region8: #{generator_forward.1} parent=0 // pred_region
    _
  $region9: #{generator_forward.1} parent=0 // pred_fallthru
    _
  // Predicated region
  $region10: #{generator_forward.1} parent=0 // pred_check
    _
  $region11: #{generator_forward.1} parent=0 // pred_check_branch
    %25 = sbr.rel (0) target = $region13
  $region12: #{generator_forward.1} parent=0 // pred_region
    _
  $region13: #{generator_forward.1} parent=0 // pred_fallthru
    _
  // Predicated region
  $region14: #{generator_forward.1} parent=0 // pred_check
    _
  $region15: #{generator_forward.1} parent=0 // pred_check_branch
    %27 = sbr.rel (0) target = $region17
  $region16: #{generator_forward.1} parent=0 // pred_region
    _
  $region17: #{generator_forward.1} parent=0 // pred_fallthru
    _
  // Predicated region
  $region18: #{generator_forward.1} parent=0 // pred_check
    _
  $region19: #{generator_forward.1} parent=0 // pred_check_branch
    %29 = sbr.rel (0) target = $region21
  $region20: #{generator_forward.1} parent=0 // pred_region
    _
  $region21: #{generator_forward.1} parent=0 // pred_fallthru
    _
  // Predicated region
  $region22: #{generator_forward.1} parent=0 // pred_check
    _
  $region23: #{generator_forward.1} parent=0 // pred_check_branch
    %31 = sbr.rel (0) target = $region25
  $region24: #{generator_forward.1} parent=0 // pred_region
    _
  $region25: #{generator_forward.1} parent=0 // pred_fallthru
    _
  // Predicated region
  $region26: #{generator_forward.1} parent=0 // pred_check
    _
  $region27: #{generator_forward.1} parent=0 // pred_check_branch
    %33 = sbr.rel (0) target = $region29
  $region28: #{generator_forward.1} parent=0 // pred_region
    _
  $region29: #{generator_forward.1} parent=0 // pred_fallthru
    _
  // Predicated region
  $region30: #{generator_forward.1} parent=0 // pred_check
    _
  $region31: #{generator_forward.1} parent=0 // pred_check_branch
    %35 = sbr.rel (0) target = $region33
  $region32: #{generator_forward.1} parent=0 // pred_region
    _
  $region33: #{generator_forward.1} parent=0 // pred_fallthru
    _
  // Predicated region
  $region34: #{generator_forward.1} parent=0 // pred_check
    _
  $region35: #{generator_forward.1} parent=0 // pred_check_branch
    %37 = sbr.rel (0) target = $region37
  $region36: #{generator_forward.1} parent=0 // pred_region
    _
  $region37: #{generator_forward.1} parent=0 // pred_fallthru
    _
  // Predicated region
  $region38: #{generator_forward.1} parent=0 // pred_check
    _
  $region39: #{generator_forward.1} parent=0 // pred_check_branch
    %39 = sbr.rel (0) target = $region41
  $region40: #{generator_forward.1} parent=0 // pred_region
    _
  $region41: #{generator_forward.1} parent=0 // pred_fallthru
    _
  // Predicated region
  $region42: #{generator_forward.1} parent=0 // pred_check
    _
  $region43: #{generator_forward.1} parent=0 // pred_check_branch
    %41 = sbr.rel (0) target = $region45
  $region44: #{generator_forward.1} parent=0 // pred_region
    _
  $region45: #{generator_forward.1} parent=0 // pred_fallthru
    _
  // Predicated region
  $region46: #{generator_forward.1} parent=0 // pred_check
    _
  $region47: #{generator_forward.1} parent=0 // pred_check_branch
    %43 = sbr.rel (0) target = $region49
  $region48: #{generator_forward.1} parent=0 // pred_region
    _
  $region49: #{generator_forward.1} parent=0 // pred_fallthru
    _
  // Predicated region
  $region50: #{generator_forward.1} parent=0 // pred_check
    _
  $region51: #{generator_forward.1} parent=0 // pred_check_branch
    %45 = sbr.rel (0) target = $region53
  $region52: #{generator_forward.1} parent=0 // pred_region
    _
  $region53: #{generator_forward.1} parent=0 // pred_fallthru
    _
  // Predicated region
  $region54: #{generator_forward.1} parent=0 // pred_check
    _
  $region55: #{generator_forward.1} parent=0 // pred_check_branch
    %47 = sbr.rel (0) target = $region57
  $region56: #{generator_forward.1} parent=0 // pred_region
    _
  $region57: #{generator_forward.1} parent=0 // pred_fallthru
    _
  // Predicated region
  $region58: #{generator_forward.1} parent=0 // pred_check
    _
  $region59: #{generator_forward.1} parent=0 // pred_check_branch
    %49 = sbr.rel (0) target = $region61
  $region60: #{generator_forward.1} parent=0 // pred_region
    _
  $region61: #{generator_forward.1} parent=0 // pred_fallthru
    _
  %v51 = vld [vmem:[%s0] sm:$0x3]
  %v52 = vpack.c.bf16 %v51, %v51
  %v53 = vld [vmem:[%s1] sm:$0xf]
  %v54 = vld [vmem:[%s1 + $0x4] sm:$0xf]
  %v57 = vunpack.c.l.b16 %v53
  %v58 = vunpack.c.l.b16 %v54
  %v59 = vpack.c.b16 %v58, %v57
  %vm61 = vcmask 130048
  %v63 = vsel %vm61, %v52, 0
  %65 = vmatpush.bf16.msra.mxu0 0
  %66 = vmatpush.bf16.msra.mxu0 0
  %67 = vmatpush.bf16.msra.mxu0 0
  %68 = vmatpush.bf16.msra.mxu0 0
  %69 = vmatpush.bf16.msra.mxu0 0
  %70 = vmatpush.bf16.msra.mxu0 0
  %71 = vmatpush.bf16.msra.mxu0 0
  %72 = vmatpush.bf16.msra.mxu0 %v59
  %73 = vmatmul.bf16.gmra.mxu0 %v63
  %v74 = vpop.f32.mrf.mxu0
  %v75 = vadd.f32 0.0, %v74
  %v76 = vpop.f32.mrf.mxu0
  %77 = vdwg.mxu0
  %v78 = vld [vmem:[%s2] sm:$0xff]
  %s79 = scalar_lea.vmem %s1, 8
  %v80 = vld [vmem:[%s79] sm:$0xf]
  %v81 = vld [vmem:[%s79 + $0x4] sm:$0xf]
  %v84 = vunpack.c.l.b16 %v80
  %v85 = vunpack.c.l.b16 %v81
  %v86 = vpack.c.b16 %v85, %v84
  %88 = vmatpush.bf16.msra.mxu0 0
  %89 = vmatpush.bf16.msra.mxu0 0
  %90 = vmatpush.bf16.msra.mxu0 0
  %91 = vmatpush.bf16.msra.mxu0 0
  %92 = vmatpush.bf16.msra.mxu0 0
  %93 = vmatpush.bf16.msra.mxu0 0
  %94 = vmatpush.bf16.msra.mxu0 0
  %95 = vmatpush.bf16.msra.mxu0 %v86
  %96 = vmatmul.bf16.gmra.mxu0 %v63
  %v97 = vpop.f32.mrf.mxu0
  %v98 = vadd.f32 0.0, %v97
  %v99 = vpop.f32.mrf.mxu0
  %100 = vdwg.mxu0
  %s101 = scalar_lea.vmem %s2, 8
  %v102 = vld [vmem:[%s101] sm:$0xff]
  %vm103 = vcmask 15360
  %v105 = vsel %vm103, %v102, 0
  %vm107 = vcmask 1041408
  %v109 = vsel %vm107, %v98, 0
  %111 = vmatpush.msra.mxu0 0.0
  %112 = vmatpush.msra.mxu0 0.0
  %113 = vmatpush.msra.mxu0 0.0
  %114 = vmatpush.msra.mxu0 0.0
  %115 = vmatpush.msra.mxu0 0.0
  %116 = vmatpush.msra.mxu0 0.0
  %117 = vmatpush.msra.mxu0 0.0
  %118 = vmatpush.msra.mxu0 0.0
  %119 = vmatpush.msra.mxu0 0.0
  %120 = vmatpush.msra.mxu0 0.0
  %121 = vmatpush.msra.mxu0 0.0
  %122 = vmatpush.msra.mxu0 0.0
  %123 = vmatpush.msra.mxu0 0.0
  %124 = vmatpush.msra.mxu0 0.0
  %125 = vmatpush.msra.mxu0 0.0
  %126 = vmatpush.msra.mxu0 %v109
  %127 = vmatmul.f32.gmra.mxu0 %v105
  %v128 = vpop.f32.mrf.mxu0
  %v129 = vadd.f32 0.0, %v128
  %130 = vdwg.mxu0
  %v132 = vsel %vm103, %v78, 0
  %v135 = vsel %vm107, %v75, 0
  %137 = vmatpush.msra.mxu0 0.0
  %138 = vmatpush.msra.mxu0 0.0
  %139 = vmatpush.msra.mxu0 0.0
  %140 = vmatpush.msra.mxu0 0.0
  %141 = vmatpush.msra.mxu0 0.0
  %142 = vmatpush.msra.mxu0 0.0
  %143 = vmatpush.msra.mxu0 0.0
  %144 = vmatpush.msra.mxu0 0.0
  %145 = vmatpush.msra.mxu0 0.0
  %146 = vmatpush.msra.mxu0 0.0
  %147 = vmatpush.msra.mxu0 0.0
  %148 = vmatpush.msra.mxu0 0.0
  %149 = vmatpush.msra.mxu0 0.0
  %150 = vmatpush.msra.mxu0 0.0
  %151 = vmatpush.msra.mxu0 0.0
  %152 = vmatpush.msra.mxu0 %v135
  %153 = vmatmul.f32.gmra.mxu0 %v132
  %v154 = vpop.f32.mrf.mxu0
  %v155 = vadd.f32 %v129, %v154
  %156 = vdwg.mxu0
  %s157 = scalar_lea.vmem %s1, 16
  %v158 = vld [vmem:[%s157] sm:$0xf]
  %v159 = vld [vmem:[%s157 + $0x4] sm:$0xf]
  %v162 = vunpack.c.l.b16 %v158
  %v163 = vunpack.c.l.b16 %v159
  %v164 = vpack.c.b16 %v163, %v162
  %166 = vmatpush.bf16.msra.mxu0 0
  %167 = vmatpush.bf16.msra.mxu0 0
  %168 = vmatpush.bf16.msra.mxu0 0
  %169 = vmatpush.bf16.msra.mxu0 0
  %170 = vmatpush.bf16.msra.mxu0 0
  %171 = vmatpush.bf16.msra.mxu0 0
  %172 = vmatpush.bf16.msra.mxu0 0
  %173 = vmatpush.bf16.msra.mxu0 %v164
  %174 = vmatmul.bf16.gmra.mxu0 %v63
  %v175 = vpop.f32.mrf.mxu0
  %v176 = vadd.f32 0.0, %v175
  %v177 = vpop.f32.mrf.mxu0
  %178 = vdwg.mxu0
  %s179 = scalar_lea.vmem %s2, 16
  %v180 = vld [vmem:[%s179] sm:$0xff]
  %v182 = vsel %vm103, %v180, 0
  %v185 = vsel %vm107, %v176, 0
  %187 = vmatpush.msra.mxu0 0.0
  %188 = vmatpush.msra.mxu0 0.0
  %189 = vmatpush.msra.mxu0 0.0
  %190 = vmatpush.msra.mxu0 0.0
  %191 = vmatpush.msra.mxu0 0.0
  %192 = vmatpush.msra.mxu0 0.0
  %193 = vmatpush.msra.mxu0 0.0
  %194 = vmatpush.msra.mxu0 0.0
  %195 = vmatpush.msra.mxu0 0.0
  %196 = vmatpush.msra.mxu0 0.0
  %197 = vmatpush.msra.mxu0 0.0
  %198 = vmatpush.msra.mxu0 0.0
  %199 = vmatpush.msra.mxu0 0.0
  %200 = vmatpush.msra.mxu0 0.0
  %201 = vmatpush.msra.mxu0 0.0
  %202 = vmatpush.msra.mxu0 %v185
  %203 = vmatmul.f32.gmra.mxu0 %v182
  %v204 = vpop.f32.mrf.mxu0
  %v205 = vadd.f32 0.0, %v204
  %206 = vdwg.mxu0
  %v207 = vadd.f32 %v155, %v205
  %s208 = scalar_lea.vmem %s1, 24
  %v209 = vld [vmem:[%s208] sm:$0xf]
  %v210 = vld [vmem:[%s208 + $0x4] sm:$0xf]
  %v213 = vunpack.c.l.b16 %v209
  %v214 = vunpack.c.l.b16 %v210
  %v215 = vpack.c.b16 %v214, %v213
  %217 = vmatpush.bf16.msra.mxu0 0
  %218 = vmatpush.bf16.msra.mxu0 0
  %219 = vmatpush.bf16.msra.mxu0 0
  %220 = vmatpush.bf16.msra.mxu0 0
  %221 = vmatpush.bf16.msra.mxu0 0
  %222 = vmatpush.bf16.msra.mxu0 0
  %223 = vmatpush.bf16.msra.mxu0 0
  %224 = vmatpush.bf16.msra.mxu0 %v215
  %225 = vmatmul.bf16.gmra.mxu0 %v63
  %v226 = vpop.f32.mrf.mxu0
  %v227 = vadd.f32 0.0, %v226
  %v228 = vpop.f32.mrf.mxu0
  %229 = vdwg.mxu0
  %s230 = scalar_lea.vmem %s2, 24
  %v231 = vld [vmem:[%s230] sm:$0xff]
  %v233 = vsel %vm103, %v231, 0
  %v236 = vsel %vm107, %v227, 0
  %238 = vmatpush.msra.mxu0 0.0
  %239 = vmatpush.msra.mxu0 0.0
  %240 = vmatpush.msra.mxu0 0.0
  %241 = vmatpush.msra.mxu0 0.0
  %242 = vmatpush.msra.mxu0 0.0
  %243 = vmatpush.msra.mxu0 0.0
  %244 = vmatpush.msra.mxu0 0.0
  %245 = vmatpush.msra.mxu0 0.0
  %246 = vmatpush.msra.mxu0 0.0
  %247 = vmatpush.msra.mxu0 0.0
  %248 = vmatpush.msra.mxu0 0.0
  %249 = vmatpush.msra.mxu0 0.0
  %250 = vmatpush.msra.mxu0 0.0
  %251 = vmatpush.msra.mxu0 0.0
  %252 = vmatpush.msra.mxu0 0.0
  %253 = vmatpush.msra.mxu0 %v236
  %254 = vmatmul.f32.gmra.mxu0 %v233
  %v255 = vpop.f32.mrf.mxu0
  %v256 = vadd.f32 0.0, %v255
  %257 = vdwg.mxu0
  %v258 = vadd.f32 %v207, %v256
  %v259 = vld [vmem:[%s3] sm:$0xff]
  %v260 = vld [vmem:[%s3 + $0x8] sm:$0xff]
  %v261 = vld [vmem:[%s3 + $0x10] sm:$0xff]
  %v262 = vld [vmem:[%s3 + $0x18] sm:$0xff]
  %v263 = vld [vmem:[%s3 + $0x20] sm:$0xff]
  %v264 = vld [vmem:[%s3 + $0x28] sm:$0xff]
  %v265 = vld [vmem:[%s3 + $0x30] sm:$0xff]
  %v266 = vld [vmem:[%s3 + $0x38] sm:$0xff]
  %v267 = vld [vmem:[%s3 + $0x40] sm:$0xff]
  %v268 = vld [vmem:[%s3 + $0x48] sm:$0xff]
  %v269 = vld [vmem:[%s3 + $0x50] sm:$0xff]
  %v270 = vld [vmem:[%s3 + $0x58] sm:$0xff]
  %v271 = vld [vmem:[%s3 + $0x60] sm:$0xff]
  %v272 = vld [vmem:[%s3 + $0x68] sm:$0xff]
  %v273 = vld [vmem:[%s3 + $0x70] sm:$0xff]
  %v274 = vld [vmem:[%s3 + $0x78] sm:$0xff]
  %v275 = vrot.slane %v258, 4
  %v276 = vadd.f32 %v258, %v275
  %v277 = vrot.slane %v276, 2
  %v278 = vadd.f32 %v276, %v277
  %v279 = vrot.slane %v278, 1
  %v280 = vadd.f32 %v278, %v279
  %v281 = vmul.f32 %v258, %v258
  %v282 = vrot.slane %v281, 4
  %v283 = vadd.f32 %v281, %v282
  %v284 = vrot.slane %v283, 2
  %v285 = vadd.f32 %v283, %v284
  %v286 = vrot.slane %v285, 1
  %v287 = vadd.f32 %v285, %v286
  %288 = vmatpush.msra.mxu0 %v274
  %289 = vmatpush.msra.mxu0 %v273
  %290 = vmatpush.msra.mxu0 %v272
  %291 = vmatpush.msra.mxu0 %v271
  %292 = vmatpush.msra.mxu0 %v270
  %293 = vmatpush.msra.mxu0 %v269
  %294 = vmatpush.msra.mxu0 %v268
  %295 = vmatpush.msra.mxu0 %v267
  %296 = vmatpush.msra.mxu0 %v266
  %297 = vmatpush.msra.mxu0 %v265
  %298 = vmatpush.msra.mxu0 %v264
  %299 = vmatpush.msra.mxu0 %v263
  %300 = vmatpush.msra.mxu0 %v262
  %301 = vmatpush.msra.mxu0 %v261
  %302 = vmatpush.msra.mxu0 %v260
  %303 = vmatpush.msra.mxu0 %v259
  %304 = vmatmul.f32.gmra.mxu0 %v280
  %v305 = vpop.f32.mrf.mxu0
  %v306 = vadd.f32 0.0, %v305
  %307 = vdwg.mxu0
  %v308 = vrcp.pop 32.0
  %v309 = vmul.f32 32.0, %v308
  %v310 = vsub.f32 1.0, %v309
  %v311 = vmul.f32 %v308, %v310
  %v312 = vadd.f32 %v308, %v311
  %vm313 = vweird.f32 %v308
  %v314 = vsel %vm313, %v308, %v312
  %v315 = vmul.f32 %v306, %v314
  %316 = vmatpush.msra.mxu0 %v274
  %317 = vmatpush.msra.mxu0 %v273
  %318 = vmatpush.msra.mxu0 %v272
  %319 = vmatpush.msra.mxu0 %v271
  %320 = vmatpush.msra.mxu0 %v270
  %321 = vmatpush.msra.mxu0 %v269
  %322 = vmatpush.msra.mxu0 %v268
  %323 = vmatpush.msra.mxu0 %v267
  %324 = vmatpush.msra.mxu0 %v266
  %325 = vmatpush.msra.mxu0 %v265
  %326 = vmatpush.msra.mxu0 %v264
  %327 = vmatpush.msra.mxu0 %v263
  %328 = vmatpush.msra.mxu0 %v262
  %329 = vmatpush.msra.mxu0 %v261
  %330 = vmatpush.msra.mxu0 %v260
  %331 = vmatpush.msra.mxu0 %v259
  %332 = vmatmul.f32.gmra.mxu0 %v287
  %v333 = vpop.f32.mrf.mxu0
  %v334 = vadd.f32 0.0, %v333
  %335 = vdwg.mxu0
  %v336 = vmul.f32 %v334, %v314
  %v337 = vmul.f32 %v315, %v315
  %v338 = vsub.f32 %v336, %v337
  %v339 = vmax.f32 %v338, 0.0
  %v340 = vld [vmem:[%s4] sm:$0x1]
  %v341 = vld [vmem:[%s4 + $0x1] sm:$0x1]
  %v342 = vadd.f32 %v339, 1e-05
  %v343 = vrsqrt.pop %v342
  %v344 = vmul.f32 %v343, %v342
  %v345 = vmul.f32 %v344, %v343
  %v346 = vmul.f32 0.5, %v345
  %v347 = vsub.f32 1.5, %v346
  %v348 = vmul.f32 %v343, %v347
  %vm349 = vweird.f32 %v342
  %vm350 = vweird.f32 %v343
  %vm351 = vmor %vm349, %vm350
  %v352 = vsel %vm351, %v343, %v348
  %v353 = vmul.f32 %v340, %v352
  %v354 = vmul.f32 %v315, %v353
  %v355 = vsub.f32 %v341, %v354
  %vm356 = vcmask 261120
  %v358 = vsel %vm356, %v353, 0
  %v361 = vsel %vm356, %v259, 0
  %v364 = vsel %vm356, %v260, 0
  %v367 = vsel %vm356, %v261, 0
  %v370 = vsel %vm356, %v262, 0
  %v373 = vsel %vm356, %v263, 0
  %v376 = vsel %vm356, %v264, 0
  %v379 = vsel %vm356, %v265, 0
  %v382 = vsel %vm356, %v266, 0
  %v385 = vsel %vm356, %v267, 0
  %v388 = vsel %vm356, %v268, 0
  %v391 = vsel %vm356, %v269, 0
  %v394 = vsel %vm356, %v270, 0
  %v397 = vsel %vm356, %v271, 0
  %v400 = vsel %vm356, %v272, 0
  %v403 = vsel %vm356, %v273, 0
  %v406 = vsel %vm356, %v274, 0
  %408 = vmatpush.xpose.msra.mxu0 %v406
  %409 = vmatpush.xpose.msra.mxu0 %v403
  %410 = vmatpush.xpose.msra.mxu0 %v400
  %411 = vmatpush.xpose.msra.mxu0 %v397
  %412 = vmatpush.xpose.msra.mxu0 %v394
  %413 = vmatpush.xpose.msra.mxu0 %v391
  %414 = vmatpush.xpose.msra.mxu0 %v388
  %415 = vmatpush.xpose.msra.mxu0 %v385
  %416 = vmatpush.xpose.msra.mxu0 %v382
  %417 = vmatpush.xpose.msra.mxu0 %v379
  %418 = vmatpush.xpose.msra.mxu0 %v376
  %419 = vmatpush.xpose.msra.mxu0 %v373
  %420 = vmatpush.xpose.msra.mxu0 %v370
  %421 = vmatpush.xpose.msra.mxu0 %v367
  %422 = vmatpush.xpose.msra.mxu0 %v364
  %423 = vmatpush.xpose.msra.mxu0 %v361
  %424 = vmatmul.f32.gmra.mxu0 %v358
  %v425 = vpop.f32.mrf.mxu0
  %v426 = vadd.f32 0.0, %v425
  %427 = vdwg.mxu0
  %v429 = vsel %vm356, %v355, 0
  %431 = vmatpush.xpose.msra.mxu0 %v406
  %432 = vmatpush.xpose.msra.mxu0 %v403
  %433 = vmatpush.xpose.msra.mxu0 %v400
  %434 = vmatpush.xpose.msra.mxu0 %v397
  %435 = vmatpush.xpose.msra.mxu0 %v394
  %436 = vmatpush.xpose.msra.mxu0 %v391
  %437 = vmatpush.xpose.msra.mxu0 %v388
  %438 = vmatpush.xpose.msra.mxu0 %v385
  %439 = vmatpush.xpose.msra.mxu0 %v382
  %440 = vmatpush.xpose.msra.mxu0 %v379
  %441 = vmatpush.xpose.msra.mxu0 %v376
  %442 = vmatpush.xpose.msra.mxu0 %v373
  %443 = vmatpush.xpose.msra.mxu0 %v370
  %444 = vmatpush.xpose.msra.mxu0 %v367
  %445 = vmatpush.xpose.msra.mxu0 %v364
  %446 = vmatpush.xpose.msra.mxu0 %v361
  %447 = vmatmul.f32.gmra.mxu0 %v429
  %v448 = vpop.f32.mrf.mxu0
  %v449 = vadd.f32 0.0, %v448
  %450 = vdwg.mxu0
  %v451 = vperm.slane %v426, 0
  %v452 = vmul.f32 %v258, %v451
  %v453 = vperm.slane %v449, 0
  %v454 = vadd.f32 %v452, %v453
  %vm455 = vcmp.ge.f32.partialorder %v454, 0.0
  %v456 = vmul.f32 %v454, 0.2
  %v457 = vsel %vm455, %v454, %v456
  %v458 = vpack.c.bf16 %v457, %v457
  %v459 = vld [vmem:[%s5] sm:$0xf]
  %v460 = vld [vmem:[%s5 + $0x4] sm:$0xf]
  %v461 = vld [vmem:[%s5 + $0x8] sm:$0xf]
  %v462 = vld [vmem:[%s5 + $0xc] sm:$0xf]
  %v463 = vld [vmem:[%s5 + $0x10] sm:$0xf]
  %v464 = vld [vmem:[%s5 + $0x14] sm:$0xf]
  %v465 = vld [vmem:[%s5 + $0x18] sm:$0xf]
  %v466 = vld [vmem:[%s5 + $0x1c] sm:$0xf]
  %v467 = vld [vmem:[%s5 + $0x20] sm:$0xf]
  %v468 = vld [vmem:[%s5 + $0x24] sm:$0xf]
  %v469 = vld [vmem:[%s5 + $0x28] sm:$0xf]
  %v470 = vld [vmem:[%s5 + $0x2c] sm:$0xf]
  %v471 = vld [vmem:[%s5 + $0x30] sm:$0xf]
  %v472 = vld [vmem:[%s5 + $0x34] sm:$0xf]
  %v473 = vld [vmem:[%s5 + $0x38] sm:$0xf]
  %v474 = vld [vmem:[%s5 + $0x3c] sm:$0xf]
  %v491 = vunpack.c.l.b16 %v459
  %v492 = vunpack.c.l.b16 %v460
  %v493 = vunpack.c.l.b16 %v461
  %v494 = vunpack.c.l.b16 %v462
  %v495 = vunpack.c.l.b16 %v463
  %v496 = vunpack.c.l.b16 %v464
  %v497 = vunpack.c.l.b16 %v465
  %v498 = vunpack.c.l.b16 %v466
  %v499 = vunpack.c.l.b16 %v467
  %v500 = vunpack.c.l.b16 %v468
  %v501 = vunpack.c.l.b16 %v469
  %v502 = vunpack.c.l.b16 %v470
  %v503 = vunpack.c.l.b16 %v471
  %v504 = vunpack.c.l.b16 %v472
  %v505 = vunpack.c.l.b16 %v473
  %v506 = vunpack.c.l.b16 %v474
  %v507 = vpack.c.b16 %v492, %v491
  %v508 = vpack.c.b16 %v494, %v493
  %v509 = vpack.c.b16 %v496, %v495
  %v510 = vpack.c.b16 %v498, %v497
  %v511 = vpack.c.b16 %v500, %v499
  %v512 = vpack.c.b16 %v502, %v501
  %v513 = vpack.c.b16 %v504, %v503
  %v514 = vpack.c.b16 %v506, %v505
  %523 = vmatpush.bf16.msra.mxu0 %v514
  %524 = vmatpush.bf16.msra.mxu0 %v513
  %525 = vmatpush.bf16.msra.mxu0 %v512
  %526 = vmatpush.bf16.msra.mxu0 %v511
  %527 = vmatpush.bf16.msra.mxu0 %v510
  %528 = vmatpush.bf16.msra.mxu0 %v509
  %529 = vmatpush.bf16.msra.mxu0 %v508
  %530 = vmatpush.bf16.msra.mxu0 %v507
  %531 = vmatmul.bf16.gmra.mxu0 %v458
  %v532 = vpop.f32.mrf.mxu0
  %v533 = vadd.f32 0.0, %v532
  %v534 = vpop.f32.mrf.mxu0
  %535 = vdwg.mxu0
  %v536 = vld [vmem:[%s6] sm:$0xff]
  %v537 = vld [vmem:[%s6 + $0x8] sm:$0x3f]
  %s538 = scalar_lea.vmem %s5, 64
  %v539 = vld [vmem:[%s538] sm:$0xf]
  %v540 = vld [vmem:[%s538 + $0x4] sm:$0xf]
  %v541 = vld [vmem:[%s538 + $0x8] sm:$0xf]
  %v542 = vld [vmem:[%s538 + $0xc] sm:$0xf]
  %v543 = vld [vmem:[%s538 + $0x10] sm:$0xf]
  %v544 = vld [vmem:[%s538 + $0x14] sm:$0xf]
  %v545 = vld [vmem:[%s538 + $0x18] sm:$0xf]
  %v546 = vld [vmem:[%s538 + $0x1c] sm:$0xf]
  %v547 = vld [vmem:[%s538 + $0x20] sm:$0xf]
  %v548 = vld [vmem:[%s538 + $0x24] sm:$0xf]
  %v549 = vld [vmem:[%s538 + $0x28] sm:$0xf]
  %v550 = vld [vmem:[%s538 + $0x2c] sm:$0xf]
  %v551 = vld [vmem:[%s538 + $0x30] sm:$0xf]
  %v552 = vld [vmem:[%s538 + $0x34] sm:$0xf]
  %v553 = vld [vmem:[%s538 + $0x38] sm:$0xf]
  %v554 = vld [vmem:[%s538 + $0x3c] sm:$0xf]
  %v571 = vunpack.c.l.b16 %v539
  %v572 = vunpack.c.l.b16 %v540
  %v573 = vunpack.c.l.b16 %v541
  %v574 = vunpack.c.l.b16 %v542
  %v575 = vunpack.c.l.b16 %v543
  %v576 = vunpack.c.l.b16 %v544
  %v577 = vunpack.c.l.b16 %v545
  %v578 = vunpack.c.l.b16 %v546
  %v579 = vunpack.c.l.b16 %v547
  %v580 = vunpack.c.l.b16 %v548
  %v581 = vunpack.c.l.b16 %v549
  %v582 = vunpack.c.l.b16 %v550
  %v583 = vunpack.c.l.b16 %v551
  %v584 = vunpack.c.l.b16 %v552
  %v585 = vunpack.c.l.b16 %v553
  %v586 = vunpack.c.l.b16 %v554
  %v587 = vpack.c.b16 %v572, %v571
  %v588 = vpack.c.b16 %v574, %v573
  %v589 = vpack.c.b16 %v576, %v575
  %v590 = vpack.c.b16 %v578, %v577
  %v591 = vpack.c.b16 %v580, %v579
  %v592 = vpack.c.b16 %v582, %v581
  %v593 = vpack.c.b16 %v584, %v583
  %v594 = vpack.c.b16 %v586, %v585
  %603 = vmatpush.bf16.msra.mxu0 %v594
  %604 = vmatpush.bf16.msra.mxu0 %v593
  %605 = vmatpush.bf16.msra.mxu0 %v592
  %606 = vmatpush.bf16.msra.mxu0 %v591
  %607 = vmatpush.bf16.msra.mxu0 %v590
  %608 = vmatpush.bf16.msra.mxu0 %v589
  %609 = vmatpush.bf16.msra.mxu0 %v588
  %610 = vmatpush.bf16.msra.mxu0 %v587
  %611 = vmatmul.bf16.gmra.mxu0 %v458
  %v612 = vpop.f32.mrf.mxu0
  %v613 = vadd.f32 0.0, %v612
  %v614 = vpop.f32.mrf.mxu0
  %615 = vdwg.mxu0
  %s616 = scalar_lea.vmem %s6, 16
  %v617 = vld [vmem:[%s616] sm:$0xff]
  %v618 = vld [vmem:[%s616 + $0x8] sm:$0x3f]
  %vm619 = vcmask 64512
  %v621 = vsel %vm619, %v617, 0
  %v624 = vsel %vm619, %v618, 0
  %626 = vmatpush.msra.mxu0 0.0
  %627 = vmatpush.msra.mxu0 0.0
  %628 = vmatpush.msra.mxu0 0.0
  %629 = vmatpush.msra.mxu0 0.0
  %630 = vmatpush.msra.mxu0 0.0
  %631 = vmatpush.msra.mxu0 0.0
  %632 = vmatpush.msra.mxu0 0.0
  %633 = vmatpush.msra.mxu0 0.0
  %634 = vmatpush.msra.mxu0 0.0
  %635 = vmatpush.msra.mxu0 0.0
  %636 = vmatpush.msra.mxu0 0.0
  %637 = vmatpush.msra.mxu0 0.0
  %638 = vmatpush.msra.mxu0 0.0
  %639 = vmatpush.msra.mxu0 0.0
  %640 = vmatpush.msra.mxu0 0.0
  %641 = vmatpush.msra.mxu0 %v613
  %642 = vmatmul.f32.gmra.mxu0 %v621
  %v643 = vpop.f32.mrf.mxu0
  %v644 = vadd.f32 0.0, %v643
  %645 = vmatmul.f32.gmra.mxu0 %v624
  %v646 = vpop.f32.mrf.mxu0
  %v647 = vadd.f32 0.0, %v646
  %648 = vdwg.mxu0
  %v650 = vsel %vm619, %v536, 0
  %v653 = vsel %vm619, %v537, 0
  %655 = vmatpush.msra.mxu0 0.0
  %656 = vmatpush.msra.mxu0 0.0
  %657 = vmatpush.msra.mxu0 0.0
  %658 = vmatpush.msra.mxu0 0.0
  %659 = vmatpush.msra.mxu0 0.0
  %660 = vmatpush.msra.mxu0 0.0
  %661 = vmatpush.msra.mxu0 0.0
  %662 = vmatpush.msra.mxu0 0.0
  %663 = vmatpush.msra.mxu0 0.0
  %664 = vmatpush.msra.mxu0 0.0
  %665 = vmatpush.msra.mxu0 0.0
  %666 = vmatpush.msra.mxu0 0.0
  %667 = vmatpush.msra.mxu0 0.0
  %668 = vmatpush.msra.mxu0 0.0
  %669 = vmatpush.msra.mxu0 0.0
  %670 = vmatpush.msra.mxu0 %v533
  %671 = vmatmul.f32.gmra.mxu0 %v650
  %v672 = vpop.f32.mrf.mxu0
  %v673 = vadd.f32 %v644, %v672
  %674 = vmatmul.f32.gmra.mxu0 %v653
  %v675 = vpop.f32.mrf.mxu0
  %v676 = vadd.f32 %v647, %v675
  %677 = vdwg.mxu0
  %s678 = scalar_lea.vmem %s5, 128
  %v679 = vld [vmem:[%s678] sm:$0xf]
  %v680 = vld [vmem:[%s678 + $0x4] sm:$0xf]
  %v681 = vld [vmem:[%s678 + $0x8] sm:$0xf]
  %v682 = vld [vmem:[%s678 + $0xc] sm:$0xf]
  %v683 = vld [vmem:[%s678 + $0x10] sm:$0xf]
  %v684 = vld [vmem:[%s678 + $0x14] sm:$0xf]
  %v685 = vld [vmem:[%s678 + $0x18] sm:$0xf]
  %v686 = vld [vmem:[%s678 + $0x1c] sm:$0xf]
  %v687 = vld [vmem:[%s678 + $0x20] sm:$0xf]
  %v688 = vld [vmem:[%s678 + $0x24] sm:$0xf]
  %v689 = vld [vmem:[%s678 + $0x28] sm:$0xf]
  %v690 = vld [vmem:[%s678 + $0x2c] sm:$0xf]
  %v691 = vld [vmem:[%s678 + $0x30] sm:$0xf]
  %v692 = vld [vmem:[%s678 + $0x34] sm:$0xf]
  %v693 = vld [vmem:[%s678 + $0x38] sm:$0xf]
  %v694 = vld [vmem:[%s678 + $0x3c] sm:$0xf]
  %v711 = vunpack.c.l.b16 %v679
  %v712 = vunpack.c.l.b16 %v680
  %v713 = vunpack.c.l.b16 %v681
  %v714 = vunpack.c.l.b16 %v682
  %v715 = vunpack.c.l.b16 %v683
  %v716 = vunpack.c.l.b16 %v684
  %v717 = vunpack.c.l.b16 %v685
  %v718 = vunpack.c.l.b16 %v686
  %v719 = vunpack.c.l.b16 %v687
  %v720 = vunpack.c.l.b16 %v688
  %v721 = vunpack.c.l.b16 %v689
  %v722 = vunpack.c.l.b16 %v690
  %v723 = vunpack.c.l.b16 %v691
  %v724 = vunpack.c.l.b16 %v692
  %v725 = vunpack.c.l.b16 %v693
  %v726 = vunpack.c.l.b16 %v694
  %v727 = vpack.c.b16 %v712, %v711
  %v728 = vpack.c.b16 %v714, %v713
  %v729 = vpack.c.b16 %v716, %v715
  %v730 = vpack.c.b16 %v718, %v717
  %v731 = vpack.c.b16 %v720, %v719
  %v732 = vpack.c.b16 %v722, %v721
  %v733 = vpack.c.b16 %v724, %v723
  %v734 = vpack.c.b16 %v726, %v725
  %743 = vmatpush.bf16.msra.mxu0 %v734
  %744 = vmatpush.bf16.msra.mxu0 %v733
  %745 = vmatpush.bf16.msra.mxu0 %v732
  %746 = vmatpush.bf16.msra.mxu0 %v731
  %747 = vmatpush.bf16.msra.mxu0 %v730
  %748 = vmatpush.bf16.msra.mxu0 %v729
  %749 = vmatpush.bf16.msra.mxu0 %v728
  %750 = vmatpush.bf16.msra.mxu0 %v727
  %751 = vmatmul.bf16.gmra.mxu0 %v458
  %v752 = vpop.f32.mrf.mxu0
  %v753 = vadd.f32 0.0, %v752
  %v754 = vpop.f32.mrf.mxu0
  %755 = vdwg.mxu0
  %s756 = scalar_lea.vmem %s6, 32
  %v757 = vld [vmem:[%s756] sm:$0xff]
  %v758 = vld [vmem:[%s756 + $0x8] sm:$0x3f]
  %v760 = vsel %vm619, %v757, 0
  %v763 = vsel %vm619, %v758, 0
  %765 = vmatpush.msra.mxu0 0.0
  %766 = vmatpush.msra.mxu0 0.0
  %767 = vmatpush.msra.mxu0 0.0
  %768 = vmatpush.msra.mxu0 0.0
  %769 = vmatpush.msra.mxu0 0.0
  %770 = vmatpush.msra.mxu0 0.0
  %771 = vmatpush.msra.mxu0 0.0
  %772 = vmatpush.msra.mxu0 0.0
  %773 = vmatpush.msra.mxu0 0.0
  %774 = vmatpush.msra.mxu0 0.0
  %775 = vmatpush.msra.mxu0 0.0
  %776 = vmatpush.msra.mxu0 0.0
  %777 = vmatpush.msra.mxu0 0.0
  %778 = vmatpush.msra.mxu0 0.0
  %779 = vmatpush.msra.mxu0 0.0
  %780 = vmatpush.msra.mxu0 %v753
  %781 = vmatmul.f32.gmra.mxu0 %v760
  %v782 = vpop.f32.mrf.mxu0
  %v783 = vadd.f32 0.0, %v782
  %784 = vmatmul.f32.gmra.mxu0 %v763
  %v785 = vpop.f32.mrf.mxu0
  %v786 = vadd.f32 0.0, %v785
  %787 = vdwg.mxu0
  %v788 = vadd.f32 %v673, %v783
  %v789 = vadd.f32 %v676, %v786
  %v790 = vld [vmem:[%s7] sm:$0xff]
  %v791 = vld [vmem:[%s7 + $0x8] sm:$0xff]
  %v792 = vld [vmem:[%s7 + $0x10] sm:$0xff]
  %v793 = vld [vmem:[%s7 + $0x18] sm:$0xff]
  %v794 = vld [vmem:[%s7 + $0x20] sm:$0xff]
  %v795 = vld [vmem:[%s7 + $0x28] sm:$0xff]
  %v796 = vld [vmem:[%s7 + $0x30] sm:$0xff]
  %v797 = vld [vmem:[%s7 + $0x38] sm:$0xff]
  %v798 = vld [vmem:[%s7 + $0x40] sm:$0xff]
  %v799 = vld [vmem:[%s7 + $0x48] sm:$0xff]
  %v800 = vld [vmem:[%s7 + $0x50] sm:$0xff]
  %v801 = vld [vmem:[%s7 + $0x58] sm:$0xff]
  %v802 = vld [vmem:[%s7 + $0x60] sm:$0xff]
  %v803 = vld [vmem:[%s7 + $0x68] sm:$0xff]
  %vm804 = vcmask 916480
  %v805 = vsel %vm804, %v788, 0.0
  %vm806 = vcmask 914432
  %v807 = vsel %vm806, %v789, 0.0
  %v808 = vadd.f32 %v805, %v807
  %v809 = vrot.slane %v808, 4
  %v810 = vadd.f32 %v808, %v809
  %v811 = vrot.slane %v810, 2
  %v812 = vadd.f32 %v810, %v811
  %v813 = vrot.slane %v812, 1
  %v814 = vadd.f32 %v812, %v813
  %v815 = vmul.f32 %v788, %v788
  %v816 = vmul.f32 %v789, %v789
  %v817 = vsel %vm804, %v815, 0.0
  %v818 = vsel %vm806, %v816, 0.0
  %v819 = vadd.f32 %v817, %v818
  %v820 = vrot.slane %v819, 4
  %v821 = vadd.f32 %v819, %v820
  %v822 = vrot.slane %v821, 2
  %v823 = vadd.f32 %v821, %v822
  %v824 = vrot.slane %v823, 1
  %v825 = vadd.f32 %v823, %v824
  %v827 = vsel %vm804, %v814, 0
  %829 = vmatpush.msra.mxu0 0.0
  %830 = vmatpush.msra.mxu0 0.0
  %831 = vmatpush.msra.mxu0 %v803
  %832 = vmatpush.msra.mxu0 %v802
  %833 = vmatpush.msra.mxu0 %v801
  %834 = vmatpush.msra.mxu0 %v800
  %835 = vmatpush.msra.mxu0 %v799
  %836 = vmatpush.msra.mxu0 %v798
  %837 = vmatpush.msra.mxu0 %v797
  %838 = vmatpush.msra.mxu0 %v796
  %839 = vmatpush.msra.mxu0 %v795
  %840 = vmatpush.msra.mxu0 %v794
  %841 = vmatpush.msra.mxu0 %v793
  %842 = vmatpush.msra.mxu0 %v792
  %843 = vmatpush.msra.mxu0 %v791
  %844 = vmatpush.msra.mxu0 %v790
  %845 = vmatmul.f32.gmra.mxu0 %v827
  %v846 = vpop.f32.mrf.mxu0
  %v847 = vadd.f32 0.0, %v846
  %848 = vdwg.mxu0
  %v849 = vrcp.pop 98.0
  %v850 = vmul.f32 98.0, %v849
  %v851 = vsub.f32 1.0, %v850
  %v852 = vmul.f32 %v849, %v851
  %v853 = vadd.f32 %v849, %v852
  %vm854 = vweird.f32 %v849
  %v855 = vsel %vm854, %v849, %v853
  %v856 = vmul.f32 %v847, %v855
  %v858 = vsel %vm804, %v825, 0
  %860 = vmatpush.msra.mxu0 0.0
  %861 = vmatpush.msra.mxu0 0.0
  %862 = vmatpush.msra.mxu0 %v803
  %863 = vmatpush.msra.mxu0 %v802
  %864 = vmatpush.msra.mxu0 %v801
  %865 = vmatpush.msra.mxu0 %v800
  %866 = vmatpush.msra.mxu0 %v799
  %867 = vmatpush.msra.mxu0 %v798
  %868 = vmatpush.msra.mxu0 %v797
  %869 = vmatpush.msra.mxu0 %v796
  %870 = vmatpush.msra.mxu0 %v795
  %871 = vmatpush.msra.mxu0 %v794
  %872 = vmatpush.msra.mxu0 %v793
  %873 = vmatpush.msra.mxu0 %v792
  %874 = vmatpush.msra.mxu0 %v791
  %875 = vmatpush.msra.mxu0 %v790
  %876 = vmatmul.f32.gmra.mxu0 %v858
  %v877 = vpop.f32.mrf.mxu0
  %v878 = vadd.f32 0.0, %v877
  %879 = vdwg.mxu0
  %v880 = vmul.f32 %v878, %v855
  %v881 = vmul.f32 %v856, %v856
  %v882 = vsub.f32 %v880, %v881
  %v883 = vmax.f32 %v882, 0.0
  %v884 = vld [vmem:[%s8] sm:$0x1]
  %v885 = vld [vmem:[%s8 + $0x1] sm:$0x1]
  %v886 = vadd.f32 %v883, 1e-05
  %v887 = vrsqrt.pop %v886
  %v888 = vmul.f32 %v887, %v886
  %v889 = vmul.f32 %v888, %v887
  %v890 = vmul.f32 0.5, %v889
  %v891 = vsub.f32 1.5, %v890
  %v892 = vmul.f32 %v887, %v891
  %vm893 = vweird.f32 %v886
  %vm894 = vweird.f32 %v887
  %vm895 = vmor %vm893, %vm894
  %v896 = vsel %vm895, %v887, %v892
  %v897 = vmul.f32 %v884, %v896
  %v898 = vmul.f32 %v856, %v897
  %v899 = vsub.f32 %v885, %v898
  %v901 = vsel %vm61, %v897, 0
  %v904 = vsel %vm61, %v790, 0
  %v907 = vsel %vm61, %v791, 0
  %v910 = vsel %vm61, %v792, 0
  %v913 = vsel %vm61, %v793, 0
  %v916 = vsel %vm61, %v794, 0
  %v919 = vsel %vm61, %v795, 0
  %v922 = vsel %vm61, %v796, 0
  %v925 = vsel %vm61, %v797, 0
  %v928 = vsel %vm61, %v798, 0
  %v931 = vsel %vm61, %v799, 0
  %v934 = vsel %vm61, %v800, 0
  %v937 = vsel %vm61, %v801, 0
  %v940 = vsel %vm61, %v802, 0
  %v943 = vsel %vm61, %v803, 0
  %945 = vmatpush.xpose.msra.mxu0 0.0
  %946 = vmatpush.xpose.msra.mxu0 0.0
  %947 = vmatpush.xpose.msra.mxu0 %v943
  %948 = vmatpush.xpose.msra.mxu0 %v940
  %949 = vmatpush.xpose.msra.mxu0 %v937
  %950 = vmatpush.xpose.msra.mxu0 %v934
  %951 = vmatpush.xpose.msra.mxu0 %v931
  %952 = vmatpush.xpose.msra.mxu0 %v928
  %953 = vmatpush.xpose.msra.mxu0 %v925
  %954 = vmatpush.xpose.msra.mxu0 %v922
  %955 = vmatpush.xpose.msra.mxu0 %v919
  %956 = vmatpush.xpose.msra.mxu0 %v916
  %957 = vmatpush.xpose.msra.mxu0 %v913
  %958 = vmatpush.xpose.msra.mxu0 %v910
  %959 = vmatpush.xpose.msra.mxu0 %v907
  %960 = vmatpush.xpose.msra.mxu0 %v904
  %961 = vmatmul.f32.gmra.mxu0 %v901
  %v962 = vpop.f32.mrf.mxu0
  %v963 = vadd.f32 0.0, %v962
  %964 = vdwg.mxu0
  %v966 = vsel %vm61, %v899, 0
  %968 = vmatpush.xpose.msra.mxu0 0.0
  %969 = vmatpush.xpose.msra.mxu0 0.0
  %970 = vmatpush.xpose.msra.mxu0 %v943
  %971 = vmatpush.xpose.msra.mxu0 %v940
  %972 = vmatpush.xpose.msra.mxu0 %v937
  %973 = vmatpush.xpose.msra.mxu0 %v934
  %974 = vmatpush.xpose.msra.mxu0 %v931
  %975 = vmatpush.xpose.msra.mxu0 %v928
  %976 = vmatpush.xpose.msra.mxu0 %v925
  %977 = vmatpush.xpose.msra.mxu0 %v922
  %978 = vmatpush.xpose.msra.mxu0 %v919
  %979 = vmatpush.xpose.msra.mxu0 %v916
  %980 = vmatpush.xpose.msra.mxu0 %v913
  %981 = vmatpush.xpose.msra.mxu0 %v910
  %982 = vmatpush.xpose.msra.mxu0 %v907
  %983 = vmatpush.xpose.msra.mxu0 %v904
  %984 = vmatmul.f32.gmra.mxu0 %v966
  %v985 = vpop.f32.mrf.mxu0
  %v986 = vadd.f32 0.0, %v985
  %987 = vdwg.mxu0
  %v988 = vperm.slane %v963, 0
  %v989 = vmul.f32 %v788, %v988
  %v990 = vmul.f32 %v789, %v988
  %v991 = vperm.slane %v986, 0
  %v992 = vadd.f32 %v989, %v991
  %v993 = vadd.f32 %v990, %v991
  %vm994 = vcmp.ge.f32.partialorder %v992, 0.0
  %vm995 = vcmp.ge.f32.partialorder %v993, 0.0
  %v996 = vmul.f32 %v992, 0.2
  %v997 = vmul.f32 %v993, 0.2
  %v998 = vsel %vm994, %v992, %v996
  %v999 = vsel %vm995, %v993, %v997
  %v1000 = vpack.c.bf16 %v999, %v998
  %v1001 = vld [vmem:[%s9] sm:$0xf]
  %v1002 = vld [vmem:[%s9 + $0x4] sm:$0xf]
  %v1003 = vld [vmem:[%s9 + $0x8] sm:$0xf]
  %v1004 = vld [vmem:[%s9 + $0xc] sm:$0xf]
  %v1005 = vld [vmem:[%s9 + $0x10] sm:$0xf]
  %v1006 = vld [vmem:[%s9 + $0x14] sm:$0xf]
  %v1007 = vld [vmem:[%s9 + $0x18] sm:$0xf]
  %v1008 = vld [vmem:[%s9 + $0x1c] sm:$0xf]
  %v1009 = vld [vmem:[%s9 + $0x20] sm:$0xf]
  %v1010 = vld [vmem:[%s9 + $0x24] sm:$0xf]
  %v1011 = vld [vmem:[%s9 + $0x28] sm:$0xf]
  %v1012 = vld [vmem:[%s9 + $0x2c] sm:$0xf]
  %v1013 = vld [vmem:[%s9 + $0x30] sm:$0xf]
  %v1014 = vld [vmem:[%s9 + $0x34] sm:$0xf]
  %v1029 = vunpack.c.l.b16 %v1001
  %v1030 = vunpack.c.l.b16 %v1002
  %v1031 = vunpack.c.l.b16 %v1003
  %v1032 = vunpack.c.l.b16 %v1004
  %v1033 = vunpack.c.l.b16 %v1005
  %v1034 = vunpack.c.l.b16 %v1006
  %v1035 = vunpack.c.l.b16 %v1007
  %v1036 = vunpack.c.l.b16 %v1008
  %v1037 = vunpack.c.l.b16 %v1009
  %v1038 = vunpack.c.l.b16 %v1010
  %v1039 = vunpack.c.l.b16 %v1011
  %v1040 = vunpack.c.l.b16 %v1012
  %v1041 = vunpack.c.l.b16 %v1013
  %v1042 = vunpack.c.l.b16 %v1014
  %v1043 = vpack.c.b16 %v1030, %v1029
  %v1044 = vpack.c.b16 %v1032, %v1031
  %v1045 = vpack.c.b16 %v1034, %v1033
  %v1046 = vpack.c.b16 %v1036, %v1035
  %v1047 = vpack.c.b16 %v1038, %v1037
  %v1048 = vpack.c.b16 %v1040, %v1039
  %v1049 = vpack.c.b16 %v1042, %v1041
  %v1058 = vsel %vm804, %v1000, 0
  %1060 = vmatpush.bf16.msra.mxu0 0
  %1061 = vmatpush.bf16.msra.mxu0 %v1049
  %1062 = vmatpush.bf16.msra.mxu0 %v1048
  %1063 = vmatpush.bf16.msra.mxu0 %v1047
  %1064 = vmatpush.bf16.msra.mxu0 %v1046
  %1065 = vmatpush.bf16.msra.mxu0 %v1045
  %1066 = vmatpush.bf16.msra.mxu0 %v1044
  %1067 = vmatpush.bf16.msra.mxu0 %v1043
  %1068 = vmatmul.bf16.gmra.mxu0 %v1058
  %v1069 = vpop.f32.mrf.mxu0
  %v1070 = vadd.f32 0.0, %v1069
  %v1071 = vpop.f32.mrf.mxu0
  %v1072 = vadd.f32 0.0, %v1071
  %1073 = vdwg.mxu0
  %v1074 = vld [vmem:[%s10] sm:$0xff]
  %v1075 = vld [vmem:[%s10 + $0x8] sm:$0xff]
  %v1076 = vld [vmem:[%s10 + $0x10] sm:$0xff]
  %v1077 = vld [vmem:[%s10 + $0x18] sm:$0xf]
  %s1078 = scalar_lea.vmem %s9, 56
  %v1079 = vld [vmem:[%s1078] sm:$0xf]
  %v1080 = vld [vmem:[%s1078 + $0x4] sm:$0xf]
  %v1081 = vld [vmem:[%s1078 + $0x8] sm:$0xf]
  %v1082 = vld [vmem:[%s1078 + $0xc] sm:$0xf]
  %v1083 = vld [vmem:[%s1078 + $0x10] sm:$0xf]
  %v1084 = vld [vmem:[%s1078 + $0x14] sm:$0xf]
  %v1085 = vld [vmem:[%s1078 + $0x18] sm:$0xf]
  %v1086 = vld [vmem:[%s1078 + $0x1c] sm:$0xf]
  %v1087 = vld [vmem:[%s1078 + $0x20] sm:$0xf]
  %v1088 = vld [vmem:[%s1078 + $0x24] sm:$0xf]
  %v1089 = vld [vmem:[%s1078 + $0x28] sm:$0xf]
  %v1090 = vld [vmem:[%s1078 + $0x2c] sm:$0xf]
  %v1091 = vld [vmem:[%s1078 + $0x30] sm:$0xf]
  %v1092 = vld [vmem:[%s1078 + $0x34] sm:$0xf]
  %v1107 = vunpack.c.l.b16 %v1079
  %v1108 = vunpack.c.l.b16 %v1080
  %v1109 = vunpack.c.l.b16 %v1081
  %v1110 = vunpack.c.l.b16 %v1082
  %v1111 = vunpack.c.l.b16 %v1083
  %v1112 = vunpack.c.l.b16 %v1084
  %v1113 = vunpack.c.l.b16 %v1085
  %v1114 = vunpack.c.l.b16 %v1086
  %v1115 = vunpack.c.l.b16 %v1087
  %v1116 = vunpack.c.l.b16 %v1088
  %v1117 = vunpack.c.l.b16 %v1089
  %v1118 = vunpack.c.l.b16 %v1090
  %v1119 = vunpack.c.l.b16 %v1091
  %v1120 = vunpack.c.l.b16 %v1092
  %v1121 = vpack.c.b16 %v1108, %v1107
  %v1122 = vpack.c.b16 %v1110, %v1109
  %v1123 = vpack.c.b16 %v1112, %v1111
  %v1124 = vpack.c.b16 %v1114, %v1113
  %v1125 = vpack.c.b16 %v1116, %v1115
  %v1126 = vpack.c.b16 %v1118, %v1117
  %v1127 = vpack.c.b16 %v1120, %v1119
  %1135 = vmatpush.bf16.msra.mxu0 0
  %1136 = vmatpush.bf16.msra.mxu0 %v1127
  %1137 = vmatpush.bf16.msra.mxu0 %v1126
  %1138 = vmatpush.bf16.msra.mxu0 %v1125
  %1139 = vmatpush.bf16.msra.mxu0 %v1124
  %1140 = vmatpush.bf16.msra.mxu0 %v1123
  %1141 = vmatpush.bf16.msra.mxu0 %v1122
  %1142 = vmatpush.bf16.msra.mxu0 %v1121
  %1143 = vmatmul.bf16.gmra.mxu0 %v1058
  %v1144 = vpop.f32.mrf.mxu0
  %v1145 = vadd.f32 0.0, %v1144
  %v1146 = vpop.f32.mrf.mxu0
  %v1147 = vadd.f32 0.0, %v1146
  %1148 = vdwg.mxu0
  %s1149 = scalar_lea.vmem %s10, 32
  %v1150 = vld [vmem:[%s1149] sm:$0xff]
  %v1151 = vld [vmem:[%s1149 + $0x8] sm:$0xff]
  %v1152 = vld [vmem:[%s1149 + $0x10] sm:$0xff]
  %v1153 = vld [vmem:[%s1149 + $0x18] sm:$0xf]
  %vm1154 = vcmask 113664
  %v1156 = vsel %vm1154, %v1150, 0
  %v1159 = vsel %vm1154, %v1151, 0
  %v1162 = vsel %vm1154, %v1152, 0
  %v1165 = vsel %vm1154, %v1153, 0
  %vm1167 = vcmask 1045504
  %v1169 = vsel %vm1167, %v1147, 0
  %1171 = vmatpush.msra.mxu0 0.0
  %1172 = vmatpush.msra.mxu0 0.0
  %1173 = vmatpush.msra.mxu0 0.0
  %1174 = vmatpush.msra.mxu0 0.0
  %1175 = vmatpush.msra.mxu0 0.0
  %1176 = vmatpush.msra.mxu0 0.0
  %1177 = vmatpush.msra.mxu0 0.0
  %1178 = vmatpush.msra.mxu0 0.0
  %1179 = vmatpush.msra.mxu0 0.0
  %1180 = vmatpush.msra.mxu0 0.0
  %1181 = vmatpush.msra.mxu0 0.0
  %1182 = vmatpush.msra.mxu0 0.0
  %1183 = vmatpush.msra.mxu0 0.0
  %1184 = vmatpush.msra.mxu0 0.0
  %1185 = vmatpush.msra.mxu0 %v1169
  %1186 = vmatpush.msra.mxu0 %v1145
  %1187 = vmatmul.f32.gmra.mxu0 %v1156
  %v1188 = vpop.f32.mrf.mxu0
  %v1189 = vadd.f32 0.0, %v1188
  %1190 = vmatmul.f32.gmra.mxu0 %v1159
  %v1191 = vpop.f32.mrf.mxu0
  %v1192 = vadd.f32 0.0, %v1191
  %1193 = vmatmul.f32.gmra.mxu0 %v1162
  %v1194 = vpop.f32.mrf.mxu0
  %v1195 = vadd.f32 0.0, %v1194
  %1196 = vmatmul.f32.gmra.mxu0 %v1165
  %v1197 = vpop.f32.mrf.mxu0
  %v1198 = vadd.f32 0.0, %v1197
  %1199 = vdwg.mxu0
  %v1201 = vsel %vm1154, %v1074, 0
  %v1204 = vsel %vm1154, %v1075, 0
  %v1207 = vsel %vm1154, %v1076, 0
  %v1210 = vsel %vm1154, %v1077, 0
  %v1213 = vsel %vm1167, %v1072, 0
  %1215 = vmatpush.msra.mxu0 0.0
  %1216 = vmatpush.msra.mxu0 0.0
  %1217 = vmatpush.msra.mxu0 0.0
  %1218 = vmatpush.msra.mxu0 0.0
  %1219 = vmatpush.msra.mxu0 0.0
  %1220 = vmatpush.msra.mxu0 0.0
  %1221 = vmatpush.msra.mxu0 0.0
  %1222 = vmatpush.msra.mxu0 0.0
  %1223 = vmatpush.msra.mxu0 0.0
  %1224 = vmatpush.msra.mxu0 0.0
  %1225 = vmatpush.msra.mxu0 0.0
  %1226 = vmatpush.msra.mxu0 0.0
  %1227 = vmatpush.msra.mxu0 0.0
  %1228 = vmatpush.msra.mxu0 0.0
  %1229 = vmatpush.msra.mxu0 %v1213
  %1230 = vmatpush.msra.mxu0 %v1070
  %1231 = vmatmul.f32.gmra.mxu0 %v1201
  %v1232 = vpop.f32.mrf.mxu0
  %v1233 = vadd.f32 %v1189, %v1232
  %1234 = vmatmul.f32.gmra.mxu0 %v1204
  %v1235 = vpop.f32.mrf.mxu0
  %v1236 = vadd.f32 %v1192, %v1235
  %1237 = vmatmul.f32.gmra.mxu0 %v1207
  %v1238 = vpop.f32.mrf.mxu0
  %v1239 = vadd.f32 %v1195, %v1238
  %1240 = vmatmul.f32.gmra.mxu0 %v1210
  %v1241 = vpop.f32.mrf.mxu0
  %v1242 = vadd.f32 %v1198, %v1241
  %1243 = vdwg.mxu0
  %s1244 = scalar_lea.vmem %s9, 112
  %v1245 = vld [vmem:[%s1244] sm:$0xf]
  %v1246 = vld [vmem:[%s1244 + $0x4] sm:$0xf]
  %v1247 = vld [vmem:[%s1244 + $0x8] sm:$0xf]
  %v1248 = vld [vmem:[%s1244 + $0xc] sm:$0xf]
  %v1249 = vld [vmem:[%s1244 + $0x10] sm:$0xf]
  %v1250 = vld [vmem:[%s1244 + $0x14] sm:$0xf]
  %v1251 = vld [vmem:[%s1244 + $0x18] sm:$0xf]
  %v1252 = vld [vmem:[%s1244 + $0x1c] sm:$0xf]
  %v1253 = vld [vmem:[%s1244 + $0x20] sm:$0xf]
  %v1254 = vld [vmem:[%s1244 + $0x24] sm:$0xf]
  %v1255 = vld [vmem:[%s1244 + $0x28] sm:$0xf]
  %v1256 = vld [vmem:[%s1244 + $0x2c] sm:$0xf]
  %v1257 = vld [vmem:[%s1244 + $0x30] sm:$0xf]
  %v1258 = vld [vmem:[%s1244 + $0x34] sm:$0xf]
  %v1273 = vunpack.c.l.b16 %v1245
  %v1274 = vunpack.c.l.b16 %v1246
  %v1275 = vunpack.c.l.b16 %v1247
  %v1276 = vunpack.c.l.b16 %v1248
  %v1277 = vunpack.c.l.b16 %v1249
  %v1278 = vunpack.c.l.b16 %v1250
  %v1279 = vunpack.c.l.b16 %v1251
  %v1280 = vunpack.c.l.b16 %v1252
  %v1281 = vunpack.c.l.b16 %v1253
  %v1282 = vunpack.c.l.b16 %v1254
  %v1283 = vunpack.c.l.b16 %v1255
  %v1284 = vunpack.c.l.b16 %v1256
  %v1285 = vunpack.c.l.b16 %v1257
  %v1286 = vunpack.c.l.b16 %v1258
  %v1287 = vpack.c.b16 %v1274, %v1273
  %v1288 = vpack.c.b16 %v1276, %v1275
  %v1289 = vpack.c.b16 %v1278, %v1277
  %v1290 = vpack.c.b16 %v1280, %v1279
  %v1291 = vpack.c.b16 %v1282, %v1281
  %v1292 = vpack.c.b16 %v1284, %v1283
  %v1293 = vpack.c.b16 %v1286, %v1285
  %1301 = vmatpush.bf16.msra.mxu0 0
  %1302 = vmatpush.bf16.msra.mxu0 %v1293
  %1303 = vmatpush.bf16.msra.mxu0 %v1292
  %1304 = vmatpush.bf16.msra.mxu0 %v1291
  %1305 = vmatpush.bf16.msra.mxu0 %v1290
  %1306 = vmatpush.bf16.msra.mxu0 %v1289
  %1307 = vmatpush.bf16.msra.mxu0 %v1288
  %1308 = vmatpush.bf16.msra.mxu0 %v1287
  %1309 = vmatmul.bf16.gmra.mxu0 %v1058
  %v1310 = vpop.f32.mrf.mxu0
  %v1311 = vadd.f32 0.0, %v1310
  %v1312 = vpop.f32.mrf.mxu0
  %v1313 = vadd.f32 0.0, %v1312
  %1314 = vdwg.mxu0
  %s1315 = scalar_lea.vmem %s10, 64
  %v1316 = vld [vmem:[%s1315] sm:$0xff]
  %v1317 = vld [vmem:[%s1315 + $0x8] sm:$0xff]
  %v1318 = vld [vmem:[%s1315 + $0x10] sm:$0xff]
  %v1319 = vld [vmem:[%s1315 + $0x18] sm:$0xf]
  %v1321 = vsel %vm1154, %v1316, 0
  %v1324 = vsel %vm1154, %v1317, 0
  %v1327 = vsel %vm1154, %v1318, 0
  %v1330 = vsel %vm1154, %v1319, 0
  %v1333 = vsel %vm1167, %v1313, 0
  %1335 = vmatpush.msra.mxu0 0.0
  %1336 = vmatpush.msra.mxu0 0.0
  %1337 = vmatpush.msra.mxu0 0.0
  %1338 = vmatpush.msra.mxu0 0.0
  %1339 = vmatpush.msra.mxu0 0.0
  %1340 = vmatpush.msra.mxu0 0.0
  %1341 = vmatpush.msra.mxu0 0.0
  %1342 = vmatpush.msra.mxu0 0.0
  %1343 = vmatpush.msra.mxu0 0.0
  %1344 = vmatpush.msra.mxu0 0.0
  %1345 = vmatpush.msra.mxu0 0.0
  %1346 = vmatpush.msra.mxu0 0.0
  %1347 = vmatpush.msra.mxu0 0.0
  %1348 = vmatpush.msra.mxu0 0.0
  %1349 = vmatpush.msra.mxu0 %v1333
  %1350 = vmatpush.msra.mxu0 %v1311
  %1351 = vmatmul.f32.gmra.mxu0 %v1321
  %v1352 = vpop.f32.mrf.mxu0
  %v1353 = vadd.f32 0.0, %v1352
  %1354 = vmatmul.f32.gmra.mxu0 %v1324
  %v1355 = vpop.f32.mrf.mxu0
  %v1356 = vadd.f32 0.0, %v1355
  %1357 = vmatmul.f32.gmra.mxu0 %v1327
  %v1358 = vpop.f32.mrf.mxu0
  %v1359 = vadd.f32 0.0, %v1358
  %1360 = vmatmul.f32.gmra.mxu0 %v1330
  %v1361 = vpop.f32.mrf.mxu0
  %v1362 = vadd.f32 0.0, %v1361
  %1363 = vdwg.mxu0
  %v1364 = vadd.f32 %v1233, %v1353
  %v1365 = vadd.f32 %v1236, %v1356
  %v1366 = vadd.f32 %v1239, %v1359
  %v1367 = vadd.f32 %v1242, %v1362
  %s1368 = scalar_lea.vmem %s9, 168
  %v1369 = vld [vmem:[%s1368] sm:$0xf]
  %v1370 = vld [vmem:[%s1368 + $0x4] sm:$0xf]
  %v1371 = vld [vmem:[%s1368 + $0x8] sm:$0xf]
  %v1372 = vld [vmem:[%s1368 + $0xc] sm:$0xf]
  %v1373 = vld [vmem:[%s1368 + $0x10] sm:$0xf]
  %v1374 = vld [vmem:[%s1368 + $0x14] sm:$0xf]
  %v1375 = vld [vmem:[%s1368 + $0x18] sm:$0xf]
  %v1376 = vld [vmem:[%s1368 + $0x1c] sm:$0xf]
  %v1377 = vld [vmem:[%s1368 + $0x20] sm:$0xf]
  %v1378 = vld [vmem:[%s1368 + $0x24] sm:$0xf]
  %v1379 = vld [vmem:[%s1368 + $0x28] sm:$0xf]
  %v1380 = vld [vmem:[%s1368 + $0x2c] sm:$0xf]
  %v1381 = vld [vmem:[%s1368 + $0x30] sm:$0xf]
  %v1382 = vld [vmem:[%s1368 + $0x34] sm:$0xf]
  %v1397 = vunpack.c.l.b16 %v1369
  %v1398 = vunpack.c.l.b16 %v1370
  %v1399 = vunpack.c.l.b16 %v1371
  %v1400 = vunpack.c.l.b16 %v1372
  %v1401 = vunpack.c.l.b16 %v1373
  %v1402 = vunpack.c.l.b16 %v1374
  %v1403 = vunpack.c.l.b16 %v1375
  %v1404 = vunpack.c.l.b16 %v1376
  %v1405 = vunpack.c.l.b16 %v1377
  %v1406 = vunpack.c.l.b16 %v1378
  %v1407 = vunpack.c.l.b16 %v1379
  %v1408 = vunpack.c.l.b16 %v1380
  %v1409 = vunpack.c.l.b16 %v1381
  %v1410 = vunpack.c.l.b16 %v1382
  %v1411 = vpack.c.b16 %v1398, %v1397
  %v1412 = vpack.c.b16 %v1400, %v1399
  %v1413 = vpack.c.b16 %v1402, %v1401
  %v1414 = vpack.c.b16 %v1404, %v1403
  %v1415 = vpack.c.b16 %v1406, %v1405
  %v1416 = vpack.c.b16 %v1408, %v1407
  %v1417 = vpack.c.b16 %v1410, %v1409
  %1425 = vmatpush.bf16.msra.mxu0 0
  %1426 = vmatpush.bf16.msra.mxu0 %v1417
  %1427 = vmatpush.bf16.msra.mxu0 %v1416
  %1428 = vmatpush.bf16.msra.mxu0 %v1415
  %1429 = vmatpush.bf16.msra.mxu0 %v1414
  %1430 = vmatpush.bf16.msra.mxu0 %v1413
  %1431 = vmatpush.bf16.msra.mxu0 %v1412
  %1432 = vmatpush.bf16.msra.mxu0 %v1411
  %1433 = vmatmul.bf16.gmra.mxu0 %v1058
  %v1434 = vpop.f32.mrf.mxu0
  %v1435 = vadd.f32 0.0, %v1434
  %v1436 = vpop.f32.mrf.mxu0
  %v1437 = vadd.f32 0.0, %v1436
  %1438 = vdwg.mxu0
  %s1439 = scalar_lea.vmem %s10, 96
  %v1440 = vld [vmem:[%s1439] sm:$0xff]
  %v1441 = vld [vmem:[%s1439 + $0x8] sm:$0xff]
  %v1442 = vld [vmem:[%s1439 + $0x10] sm:$0xff]
  %v1443 = vld [vmem:[%s1439 + $0x18] sm:$0xf]
  %v1445 = vsel %vm1154, %v1440, 0
  %v1448 = vsel %vm1154, %v1441, 0
  %v1451 = vsel %vm1154, %v1442, 0
  %v1454 = vsel %vm1154, %v1443, 0
  %v1457 = vsel %vm1167, %v1437, 0
  %1459 = vmatpush.msra.mxu0 0.0
  %1460 = vmatpush.msra.mxu0 0.0
  %1461 = vmatpush.msra.mxu0 0.0
  %1462 = vmatpush.msra.mxu0 0.0
  %1463 = vmatpush.msra.mxu0 0.0
  %1464 = vmatpush.msra.mxu0 0.0
  %1465 = vmatpush.msra.mxu0 0.0
  %1466 = vmatpush.msra.mxu0 0.0
  %1467 = vmatpush.msra.mxu0 0.0
  %1468 = vmatpush.msra.mxu0 0.0
  %1469 = vmatpush.msra.mxu0 0.0
  %1470 = vmatpush.msra.mxu0 0.0
  %1471 = vmatpush.msra.mxu0 0.0
  %1472 = vmatpush.msra.mxu0 0.0
  %1473 = vmatpush.msra.mxu0 %v1457
  %1474 = vmatpush.msra.mxu0 %v1435
  %1475 = vmatmul.f32.gmra.mxu0 %v1445
  %v1476 = vpop.f32.mrf.mxu0
  %v1477 = vadd.f32 0.0, %v1476
  %1478 = vmatmul.f32.gmra.mxu0 %v1448
  %v1479 = vpop.f32.mrf.mxu0
  %v1480 = vadd.f32 0.0, %v1479
  %1481 = vmatmul.f32.gmra.mxu0 %v1451
  %v1482 = vpop.f32.mrf.mxu0
  %v1483 = vadd.f32 0.0, %v1482
  %1484 = vmatmul.f32.gmra.mxu0 %v1454
  %v1485 = vpop.f32.mrf.mxu0
  %v1486 = vadd.f32 0.0, %v1485
  %1487 = vdwg.mxu0
  %v1488 = vadd.f32 %v1364, %v1477
  %v1489 = vadd.f32 %v1365, %v1480
  %v1490 = vadd.f32 %v1366, %v1483
  %v1491 = vadd.f32 %v1367, %v1486
  %v1492 = vld [vmem:[%s11] sm:$0xff]
  %v1493 = vld [vmem:[%s11 + $0x8] sm:$0xff]
  %v1494 = vld [vmem:[%s11 + $0x10] sm:$0xff]
  %v1495 = vld [vmem:[%s11 + $0x18] sm:$0xff]
  %v1496 = vld [vmem:[%s11 + $0x20] sm:$0xff]
  %v1497 = vld [vmem:[%s11 + $0x28] sm:$0xff]
  %v1498 = vld [vmem:[%s11 + $0x30] sm:$0xff]
  %v1499 = vld [vmem:[%s11 + $0x38] sm:$0xff]
  %v1500 = vld [vmem:[%s11 + $0x40] sm:$0xff]
  %v1501 = vld [vmem:[%s11 + $0x48] sm:$0xff]
  %v1502 = vld [vmem:[%s11 + $0x50] sm:$0xff]
  %v1503 = vld [vmem:[%s11 + $0x58] sm:$0xff]
  %v1504 = vld [vmem:[%s11 + $0x60] sm:$0xff]
  %v1505 = vld [vmem:[%s11 + $0x68] sm:$0xff]
  %v1506 = vsel %vm804, %v1488, 0.0
  %v1507 = vsel %vm804, %v1489, 0.0
  %v1508 = vadd.f32 %v1506, %v1507
  %v1509 = vsel %vm804, %v1490, 0.0
  %v1510 = vadd.f32 %v1508, %v1509
  %vm1511 = vcmask 912384
  %v1512 = vsel %vm1511, %v1491, 0.0
  %v1513 = vadd.f32 %v1510, %v1512
  %v1514 = vrot.slane %v1513, 4
  %v1515 = vadd.f32 %v1513, %v1514
  %v1516 = vrot.slane %v1515, 2
  %v1517 = vadd.f32 %v1515, %v1516
  %v1518 = vrot.slane %v1517, 1
  %v1519 = vadd.f32 %v1517, %v1518
  %v1520 = vmul.f32 %v1488, %v1488
  %v1521 = vmul.f32 %v1489, %v1489
  %v1522 = vmul.f32 %v1490, %v1490
  %v1523 = vmul.f32 %v1491, %v1491
  %v1524 = vsel %vm804, %v1520, 0.0
  %v1525 = vsel %vm804, %v1521, 0.0
  %v1526 = vadd.f32 %v1524, %v1525
  %v1527 = vsel %vm804, %v1522, 0.0
  %v1528 = vadd.f32 %v1526, %v1527
  %v1529 = vsel %vm1511, %v1523, 0.0
  %v1530 = vadd.f32 %v1528, %v1529
  %v1531 = vrot.slane %v1530, 4
  %v1532 = vadd.f32 %v1530, %v1531
  %v1533 = vrot.slane %v1532, 2
  %v1534 = vadd.f32 %v1532, %v1533
  %v1535 = vrot.slane %v1534, 1
  %v1536 = vadd.f32 %v1534, %v1535
  %v1538 = vsel %vm804, %v1519, 0
  %1540 = vmatpush.msra.mxu0 0.0
  %1541 = vmatpush.msra.mxu0 0.0
  %1542 = vmatpush.msra.mxu0 %v1505
  %1543 = vmatpush.msra.mxu0 %v1504
  %1544 = vmatpush.msra.mxu0 %v1503
  %1545 = vmatpush.msra.mxu0 %v1502
  %1546 = vmatpush.msra.mxu0 %v1501
  %1547 = vmatpush.msra.mxu0 %v1500
  %1548 = vmatpush.msra.mxu0 %v1499
  %1549 = vmatpush.msra.mxu0 %v1498
  %1550 = vmatpush.msra.mxu0 %v1497
  %1551 = vmatpush.msra.mxu0 %v1496
  %1552 = vmatpush.msra.mxu0 %v1495
  %1553 = vmatpush.msra.mxu0 %v1494
  %1554 = vmatpush.msra.mxu0 %v1493
  %1555 = vmatpush.msra.mxu0 %v1492
  %1556 = vmatmul.f32.gmra.mxu0 %v1538
  %v1557 = vpop.f32.mrf.mxu0
  %v1558 = vadd.f32 0.0, %v1557
  %1559 = vdwg.mxu0
  %v1560 = vrcp.pop 392.0
  %v1561 = vmul.f32 392.0, %v1560
  %v1562 = vsub.f32 1.0, %v1561
  %v1563 = vmul.f32 %v1560, %v1562
  %v1564 = vadd.f32 %v1560, %v1563
  %vm1565 = vweird.f32 %v1560
  %v1566 = vsel %vm1565, %v1560, %v1564
  %v1567 = vmul.f32 %v1558, %v1566
  %v1569 = vsel %vm804, %v1536, 0
  %1571 = vmatpush.msra.mxu0 0.0
  %1572 = vmatpush.msra.mxu0 0.0
  %1573 = vmatpush.msra.mxu0 %v1505
  %1574 = vmatpush.msra.mxu0 %v1504
  %1575 = vmatpush.msra.mxu0 %v1503
  %1576 = vmatpush.msra.mxu0 %v1502
  %1577 = vmatpush.msra.mxu0 %v1501
  %1578 = vmatpush.msra.mxu0 %v1500
  %1579 = vmatpush.msra.mxu0 %v1499
  %1580 = vmatpush.msra.mxu0 %v1498
  %1581 = vmatpush.msra.mxu0 %v1497
  %1582 = vmatpush.msra.mxu0 %v1496
  %1583 = vmatpush.msra.mxu0 %v1495
  %1584 = vmatpush.msra.mxu0 %v1494
  %1585 = vmatpush.msra.mxu0 %v1493
  %1586 = vmatpush.msra.mxu0 %v1492
  %1587 = vmatmul.f32.gmra.mxu0 %v1569
  %v1588 = vpop.f32.mrf.mxu0
  %v1589 = vadd.f32 0.0, %v1588
  %1590 = vdwg.mxu0
  %v1591 = vmul.f32 %v1589, %v1566
  %v1592 = vmul.f32 %v1567, %v1567
  %v1593 = vsub.f32 %v1591, %v1592
  %v1594 = vmax.f32 %v1593, 0.0
  %v1595 = vld [vmem:[%s12] sm:$0x1]
  %v1596 = vld [vmem:[%s12 + $0x1] sm:$0x1]
  %v1597 = vadd.f32 %v1594, 1e-05
  %v1598 = vrsqrt.pop %v1597
  %v1599 = vmul.f32 %v1598, %v1597
  %v1600 = vmul.f32 %v1599, %v1598
  %v1601 = vmul.f32 0.5, %v1600
  %v1602 = vsub.f32 1.5, %v1601
  %v1603 = vmul.f32 %v1598, %v1602
  %vm1604 = vweird.f32 %v1597
  %vm1605 = vweird.f32 %v1598
  %vm1606 = vmor %vm1604, %vm1605
  %v1607 = vsel %vm1606, %v1598, %v1603
  %v1608 = vmul.f32 %v1595, %v1607
  %v1609 = vmul.f32 %v1567, %v1608
  %v1610 = vsub.f32 %v1596, %v1609
  %v1612 = vsel %vm619, %v1608, 0
  %v1615 = vsel %vm619, %v1492, 0
  %v1618 = vsel %vm619, %v1493, 0
  %v1621 = vsel %vm619, %v1494, 0
  %v1624 = vsel %vm619, %v1495, 0
  %v1627 = vsel %vm619, %v1496, 0
  %v1630 = vsel %vm619, %v1497, 0
  %v1633 = vsel %vm619, %v1498, 0
  %v1636 = vsel %vm619, %v1499, 0
  %v1639 = vsel %vm619, %v1500, 0
  %v1642 = vsel %vm619, %v1501, 0
  %v1645 = vsel %vm619, %v1502, 0
  %v1648 = vsel %vm619, %v1503, 0
  %v1651 = vsel %vm619, %v1504, 0
  %v1654 = vsel %vm619, %v1505, 0
  %1656 = vmatpush.xpose.msra.mxu0 0.0
  %1657 = vmatpush.xpose.msra.mxu0 0.0
  %1658 = vmatpush.xpose.msra.mxu0 %v1654
  %1659 = vmatpush.xpose.msra.mxu0 %v1651
  %1660 = vmatpush.xpose.msra.mxu0 %v1648
  %1661 = vmatpush.xpose.msra.mxu0 %v1645
  %1662 = vmatpush.xpose.msra.mxu0 %v1642
  %1663 = vmatpush.xpose.msra.mxu0 %v1639
  %1664 = vmatpush.xpose.msra.mxu0 %v1636
  %1665 = vmatpush.xpose.msra.mxu0 %v1633
  %1666 = vmatpush.xpose.msra.mxu0 %v1630
  %1667 = vmatpush.xpose.msra.mxu0 %v1627
  %1668 = vmatpush.xpose.msra.mxu0 %v1624
  %1669 = vmatpush.xpose.msra.mxu0 %v1621
  %1670 = vmatpush.xpose.msra.mxu0 %v1618
  %1671 = vmatpush.xpose.msra.mxu0 %v1615
  %1672 = vmatmul.f32.gmra.mxu0 %v1612
  %v1673 = vpop.f32.mrf.mxu0
  %v1674 = vadd.f32 0.0, %v1673
  %1675 = vdwg.mxu0
  %v1677 = vsel %vm619, %v1610, 0
  %1679 = vmatpush.xpose.msra.mxu0 0.0
  %1680 = vmatpush.xpose.msra.mxu0 0.0
  %1681 = vmatpush.xpose.msra.mxu0 %v1654
  %1682 = vmatpush.xpose.msra.mxu0 %v1651
  %1683 = vmatpush.xpose.msra.mxu0 %v1648
  %1684 = vmatpush.xpose.msra.mxu0 %v1645
  %1685 = vmatpush.xpose.msra.mxu0 %v1642
  %1686 = vmatpush.xpose.msra.mxu0 %v1639
  %1687 = vmatpush.xpose.msra.mxu0 %v1636
  %1688 = vmatpush.xpose.msra.mxu0 %v1633
  %1689 = vmatpush.xpose.msra.mxu0 %v1630
  %1690 = vmatpush.xpose.msra.mxu0 %v1627
  %1691 = vmatpush.xpose.msra.mxu0 %v1624
  %1692 = vmatpush.xpose.msra.mxu0 %v1621
  %1693 = vmatpush.xpose.msra.mxu0 %v1618
  %1694 = vmatpush.xpose.msra.mxu0 %v1615
  %1695 = vmatmul.f32.gmra.mxu0 %v1677
  %v1696 = vpop.f32.mrf.mxu0
  %v1697 = vadd.f32 0.0, %v1696
  %1698 = vdwg.mxu0
  %v1699 = vperm.slane %v1674, 0
  %v1700 = vmul.f32 %v1488, %v1699
  %v1701 = vmul.f32 %v1489, %v1699
  %v1702 = vmul.f32 %v1490, %v1699
  %v1703 = vmul.f32 %v1491, %v1699
  %v1704 = vperm.slane %v1697, 0
  %v1705 = vadd.f32 %v1700, %v1704
  %v1706 = vadd.f32 %v1701, %v1704
  %v1707 = vadd.f32 %v1702, %v1704
  %v1708 = vadd.f32 %v1703, %v1704
  %vm1709 = vcmp.ge.f32.partialorder %v1705, 0.0
  %vm1710 = vcmp.ge.f32.partialorder %v1706, 0.0
  %vm1711 = vcmp.ge.f32.partialorder %v1707, 0.0
  %vm1712 = vcmp.ge.f32.partialorder %v1708, 0.0
  %v1713 = vmul.f32 %v1705, 0.2
  %v1714 = vmul.f32 %v1706, 0.2
  %v1715 = vmul.f32 %v1707, 0.2
  %v1716 = vmul.f32 %v1708, 0.2
  %v1717 = vsel %vm1709, %v1705, %v1713
  %v1718 = vsel %vm1710, %v1706, %v1714
  %v1719 = vsel %vm1711, %v1707, %v1715
  %v1720 = vsel %vm1712, %v1708, %v1716
  %v1721 = vpack.c.bf16 %v1718, %v1717
  %v1722 = vpack.c.bf16 %v1720, %v1719
  %v1723 = vld [vmem:[%s13] sm:$0xf]
  %v1724 = vld [vmem:[%s13 + $0x4] sm:$0xf]
  %v1725 = vld [vmem:[%s13 + $0x8] sm:$0xf]
  %v1726 = vld [vmem:[%s13 + $0xc] sm:$0xf]
  %v1727 = vld [vmem:[%s13 + $0x10] sm:$0xf]
  %v1728 = vld [vmem:[%s13 + $0x14] sm:$0xf]
  %v1729 = vld [vmem:[%s13 + $0x18] sm:$0xf]
  %v1730 = vld [vmem:[%s13 + $0x1c] sm:$0xf]
  %v1731 = vld [vmem:[%s13 + $0x20] sm:$0xf]
  %v1732 = vld [vmem:[%s13 + $0x24] sm:$0xf]
  %v1733 = vld [vmem:[%s13 + $0x28] sm:$0xf]
  %v1734 = vld [vmem:[%s13 + $0x2c] sm:$0xf]
  %v1735 = vld [vmem:[%s13 + $0x30] sm:$0xf]
  %v1736 = vld [vmem:[%s13 + $0x34] sm:$0xf]
  %v1751 = vunpack.c.l.b16 %v1723
  %v1752 = vunpack.c.l.b16 %v1724
  %v1753 = vunpack.c.l.b16 %v1725
  %v1754 = vunpack.c.l.b16 %v1726
  %v1755 = vunpack.c.l.b16 %v1727
  %v1756 = vunpack.c.l.b16 %v1728
  %v1757 = vunpack.c.l.b16 %v1729
  %v1758 = vunpack.c.l.b16 %v1730
  %v1759 = vunpack.c.l.b16 %v1731
  %v1760 = vunpack.c.l.b16 %v1732
  %v1761 = vunpack.c.l.b16 %v1733
  %v1762 = vunpack.c.l.b16 %v1734
  %v1763 = vunpack.c.l.b16 %v1735
  %v1764 = vunpack.c.l.b16 %v1736
  %v1765 = vpack.c.b16 %v1752, %v1751
  %v1766 = vpack.c.b16 %v1754, %v1753
  %v1767 = vpack.c.b16 %v1756, %v1755
  %v1768 = vpack.c.b16 %v1758, %v1757
  %v1769 = vpack.c.b16 %v1760, %v1759
  %v1770 = vpack.c.b16 %v1762, %v1761
  %v1771 = vpack.c.b16 %v1764, %v1763
  %v1780 = vsel %vm804, %v1721, 0
  %v1783 = vsel %vm804, %v1722, 0
  %1785 = vmatpush.bf16.msra.mxu0 0
  %1786 = vmatpush.bf16.msra.mxu0 %v1771
  %1787 = vmatpush.bf16.msra.mxu0 %v1770
  %1788 = vmatpush.bf16.msra.mxu0 %v1769
  %1789 = vmatpush.bf16.msra.mxu0 %v1768
  %1790 = vmatpush.bf16.msra.mxu0 %v1767
  %1791 = vmatpush.bf16.msra.mxu0 %v1766
  %1792 = vmatpush.bf16.msra.mxu0 %v1765
  %1793 = vmatmul.bf16.gmra.mxu0 %v1780
  %v1794 = vpop.f32.mrf.mxu0
  %v1795 = vadd.f32 0.0, %v1794
  %v1796 = vpop.f32.mrf.mxu0
  %v1797 = vadd.f32 0.0, %v1796
  %1798 = vmatmul.bf16.gmra.mxu0 %v1783
  %v1799 = vpop.f32.mrf.mxu0
  %v1800 = vadd.f32 0.0, %v1799
  %v1801 = vpop.f32.mrf.mxu0
  %v1802 = vadd.f32 0.0, %v1801
  %1803 = vdwg.mxu0
  %v1804 = vld [vmem:[%s14] sm:$0xff]
  %v1805 = vld [vmem:[%s14 + $0x8] sm:$0xff]
  %v1806 = vld [vmem:[%s14 + $0x10] sm:$0xff]
  %v1807 = vld [vmem:[%s14 + $0x18] sm:$0xff]
  %v1808 = vld [vmem:[%s14 + $0x20] sm:$0xff]
  %v1809 = vld [vmem:[%s14 + $0x28] sm:$0xff]
  %v1810 = vld [vmem:[%s14 + $0x30] sm:$0xff]
  %s1811 = scalar_lea.vmem %s13, 56
  %v1812 = vld [vmem:[%s1811] sm:$0xf]
  %v1813 = vld [vmem:[%s1811 + $0x4] sm:$0xf]
  %v1814 = vld [vmem:[%s1811 + $0x8] sm:$0xf]
  %v1815 = vld [vmem:[%s1811 + $0xc] sm:$0xf]
  %v1816 = vld [vmem:[%s1811 + $0x10] sm:$0xf]
  %v1817 = vld [vmem:[%s1811 + $0x14] sm:$0xf]
  %v1818 = vld [vmem:[%s1811 + $0x18] sm:$0xf]
  %v1819 = vld [vmem:[%s1811 + $0x1c] sm:$0xf]
  %v1820 = vld [vmem:[%s1811 + $0x20] sm:$0xf]
  %v1821 = vld [vmem:[%s1811 + $0x24] sm:$0xf]
  %v1822 = vld [vmem:[%s1811 + $0x28] sm:$0xf]
  %v1823 = vld [vmem:[%s1811 + $0x2c] sm:$0xf]
  %v1824 = vld [vmem:[%s1811 + $0x30] sm:$0xf]
  %v1825 = vld [vmem:[%s1811 + $0x34] sm:$0xf]
  %v1840 = vunpack.c.l.b16 %v1812
  %v1841 = vunpack.c.l.b16 %v1813
  %v1842 = vunpack.c.l.b16 %v1814
  %v1843 = vunpack.c.l.b16 %v1815
  %v1844 = vunpack.c.l.b16 %v1816
  %v1845 = vunpack.c.l.b16 %v1817
  %v1846 = vunpack.c.l.b16 %v1818
  %v1847 = vunpack.c.l.b16 %v1819
  %v1848 = vunpack.c.l.b16 %v1820
  %v1849 = vunpack.c.l.b16 %v1821
  %v1850 = vunpack.c.l.b16 %v1822
  %v1851 = vunpack.c.l.b16 %v1823
  %v1852 = vunpack.c.l.b16 %v1824
  %v1853 = vunpack.c.l.b16 %v1825
  %v1854 = vpack.c.b16 %v1841, %v1840
  %v1855 = vpack.c.b16 %v1843, %v1842
  %v1856 = vpack.c.b16 %v1845, %v1844
  %v1857 = vpack.c.b16 %v1847, %v1846
  %v1858 = vpack.c.b16 %v1849, %v1848
  %v1859 = vpack.c.b16 %v1851, %v1850
  %v1860 = vpack.c.b16 %v1853, %v1852
  %1868 = vmatpush.bf16.msra.mxu0 0
  %1869 = vmatpush.bf16.msra.mxu0 %v1860
  %1870 = vmatpush.bf16.msra.mxu0 %v1859
  %1871 = vmatpush.bf16.msra.mxu0 %v1858
  %1872 = vmatpush.bf16.msra.mxu0 %v1857
  %1873 = vmatpush.bf16.msra.mxu0 %v1856
  %1874 = vmatpush.bf16.msra.mxu0 %v1855
  %1875 = vmatpush.bf16.msra.mxu0 %v1854
  %1876 = vmatmul.bf16.gmra.mxu0 %v1780
  %v1877 = vpop.f32.mrf.mxu0
  %v1878 = vadd.f32 0.0, %v1877
  %v1879 = vpop.f32.mrf.mxu0
  %v1880 = vadd.f32 0.0, %v1879
  %1881 = vmatmul.bf16.gmra.mxu0 %v1783
  %v1882 = vpop.f32.mrf.mxu0
  %v1883 = vadd.f32 0.0, %v1882
  %v1884 = vpop.f32.mrf.mxu0
  %v1885 = vadd.f32 0.0, %v1884
  %1886 = vdwg.mxu0
  %s1887 = scalar_lea.vmem %s14, 56
  %v1888 = vld [vmem:[%s1887] sm:$0xff]
  %v1889 = vld [vmem:[%s1887 + $0x8] sm:$0xff]
  %v1890 = vld [vmem:[%s1887 + $0x10] sm:$0xff]
  %v1891 = vld [vmem:[%s1887 + $0x18] sm:$0xff]
  %v1892 = vld [vmem:[%s1887 + $0x20] sm:$0xff]
  %v1893 = vld [vmem:[%s1887 + $0x28] sm:$0xff]
  %v1894 = vld [vmem:[%s1887 + $0x30] sm:$0xff]
  %vm1895 = vcmask 228352
  %v1897 = vsel %vm1895, %v1888, 0
  %v1900 = vsel %vm1895, %v1889, 0
  %v1903 = vsel %vm1895, %v1890, 0
  %v1906 = vsel %vm1895, %v1891, 0
  %v1909 = vsel %vm1895, %v1892, 0
  %v1912 = vsel %vm1895, %v1893, 0
  %v1915 = vsel %vm1895, %v1894, 0
  %vm1917 = vcmask 1043456
  %v1919 = vsel %vm1917, %v1885, 0
  %1921 = vmatpush.msra.mxu0 0.0
  %1922 = vmatpush.msra.mxu0 0.0
  %1923 = vmatpush.msra.mxu0 0.0
  %1924 = vmatpush.msra.mxu0 0.0
  %1925 = vmatpush.msra.mxu0 0.0
  %1926 = vmatpush.msra.mxu0 0.0
  %1927 = vmatpush.msra.mxu0 0.0
  %1928 = vmatpush.msra.mxu0 0.0
  %1929 = vmatpush.msra.mxu0 0.0
  %1930 = vmatpush.msra.mxu0 0.0
  %1931 = vmatpush.msra.mxu0 0.0
  %1932 = vmatpush.msra.mxu0 0.0
  %1933 = vmatpush.msra.mxu0 %v1919
  %1934 = vmatpush.msra.mxu0 %v1883
  %1935 = vmatpush.msra.mxu0 %v1880
  %1936 = vmatpush.msra.mxu0 %v1878
  %1937 = vmatmul.f32.gmra.mxu0 %v1897
  %v1938 = vpop.f32.mrf.mxu0
  %v1939 = vadd.f32 0.0, %v1938
  %1940 = vmatmul.f32.gmra.mxu0 %v1900
  %v1941 = vpop.f32.mrf.mxu0
  %v1942 = vadd.f32 0.0, %v1941
  %1943 = vmatmul.f32.gmra.mxu0 %v1903
  %v1944 = vpop.f32.mrf.mxu0
  %v1945 = vadd.f32 0.0, %v1944
  %1946 = vmatmul.f32.gmra.mxu0 %v1906
  %v1947 = vpop.f32.mrf.mxu0
  %v1948 = vadd.f32 0.0, %v1947
  %1949 = vmatmul.f32.gmra.mxu0 %v1909
  %v1950 = vpop.f32.mrf.mxu0
  %v1951 = vadd.f32 0.0, %v1950
  %1952 = vmatmul.f32.gmra.mxu0 %v1912
  %v1953 = vpop.f32.mrf.mxu0
  %v1954 = vadd.f32 0.0, %v1953
  %1955 = vmatmul.f32.gmra.mxu0 %v1915
  %v1956 = vpop.f32.mrf.mxu0
  %v1957 = vadd.f32 0.0, %v1956
  %1958 = vdwg.mxu0
  %v1960 = vsel %vm1895, %v1804, 0
  %v1963 = vsel %vm1895, %v1805, 0
  %v1966 = vsel %vm1895, %v1806, 0
  %v1969 = vsel %vm1895, %v1807, 0
  %v1972 = vsel %vm1895, %v1808, 0
  %v1975 = vsel %vm1895, %v1809, 0
  %v1978 = vsel %vm1895, %v1810, 0
  %v1981 = vsel %vm1917, %v1802, 0
  %1983 = vmatpush.msra.mxu0 0.0
  %1984 = vmatpush.msra.mxu0 0.0
  %1985 = vmatpush.msra.mxu0 0.0
  %1986 = vmatpush.msra.mxu0 0.0
  %1987 = vmatpush.msra.mxu0 0.0
  %1988 = vmatpush.msra.mxu0 0.0
  %1989 = vmatpush.msra.mxu0 0.0
  %1990 = vmatpush.msra.mxu0 0.0
  %1991 = vmatpush.msra.mxu0 0.0
  %1992 = vmatpush.msra.mxu0 0.0
  %1993 = vmatpush.msra.mxu0 0.0
  %1994 = vmatpush.msra.mxu0 0.0
  %1995 = vmatpush.msra.mxu0 %v1981
  %1996 = vmatpush.msra.mxu0 %v1800
  %1997 = vmatpush.msra.mxu0 %v1797
  %1998 = vmatpush.msra.mxu0 %v1795
  %1999 = vmatmul.f32.gmra.mxu0 %v1960
  %v2000 = vpop.f32.mrf.mxu0
  %v2001 = vadd.f32 %v1939, %v2000
  %2002 = vmatmul.f32.gmra.mxu0 %v1963
  %v2003 = vpop.f32.mrf.mxu0
  %v2004 = vadd.f32 %v1942, %v2003
  %2005 = vmatmul.f32.gmra.mxu0 %v1966
  %v2006 = vpop.f32.mrf.mxu0
  %v2007 = vadd.f32 %v1945, %v2006
  %2008 = vmatmul.f32.gmra.mxu0 %v1969
  %v2009 = vpop.f32.mrf.mxu0
  %v2010 = vadd.f32 %v1948, %v2009
  %2011 = vmatmul.f32.gmra.mxu0 %v1972
  %v2012 = vpop.f32.mrf.mxu0
  %v2013 = vadd.f32 %v1951, %v2012
  %2014 = vmatmul.f32.gmra.mxu0 %v1975
  %v2015 = vpop.f32.mrf.mxu0
  %v2016 = vadd.f32 %v1954, %v2015
  %2017 = vmatmul.f32.gmra.mxu0 %v1978
  %v2018 = vpop.f32.mrf.mxu0
  %v2019 = vadd.f32 %v1957, %v2018
  %2020 = vdwg.mxu0
  %s2021 = scalar_lea.vmem %s13, 112
  %v2022 = vld [vmem:[%s2021] sm:$0xf]
  %v2023 = vld [vmem:[%s2021 + $0x4] sm:$0xf]
  %v2024 = vld [vmem:[%s2021 + $0x8] sm:$0xf]
  %v2025 = vld [vmem:[%s2021 + $0xc] sm:$0xf]
  %v2026 = vld [vmem:[%s2021 + $0x10] sm:$0xf]
  %v2027 = vld [vmem:[%s2021 + $0x14] sm:$0xf]
  %v2028 = vld [vmem:[%s2021 + $0x18] sm:$0xf]
  %v2029 = vld [vmem:[%s2021 + $0x1c] sm:$0xf]
  %v2030 = vld [vmem:[%s2021 + $0x20] sm:$0xf]
  %v2031 = vld [vmem:[%s2021 + $0x24] sm:$0xf]
  %v2032 = vld [vmem:[%s2021 + $0x28] sm:$0xf]
  %v2033 = vld [vmem:[%s2021 + $0x2c] sm:$0xf]
  %v2034 = vld [vmem:[%s2021 + $0x30] sm:$0xf]
  %v2035 = vld [vmem:[%s2021 + $0x34] sm:$0xf]
  %v2050 = vunpack.c.l.b16 %v2022
  %v2051 = vunpack.c.l.b16 %v2023
  %v2052 = vunpack.c.l.b16 %v2024
  %v2053 = vunpack.c.l.b16 %v2025
  %v2054 = vunpack.c.l.b16 %v2026
  %v2055 = vunpack.c.l.b16 %v2027
  %v2056 = vunpack.c.l.b16 %v2028
  %v2057 = vunpack.c.l.b16 %v2029
  %v2058 = vunpack.c.l.b16 %v2030
  %v2059 = vunpack.c.l.b16 %v2031
  %v2060 = vunpack.c.l.b16 %v2032
  %v2061 = vunpack.c.l.b16 %v2033
  %v2062 = vunpack.c.l.b16 %v2034
  %v2063 = vunpack.c.l.b16 %v2035
  %v2064 = vpack.c.b16 %v2051, %v2050
  %v2065 = vpack.c.b16 %v2053, %v2052
  %v2066 = vpack.c.b16 %v2055, %v2054
  %v2067 = vpack.c.b16 %v2057, %v2056
  %v2068 = vpack.c.b16 %v2059, %v2058
  %v2069 = vpack.c.b16 %v2061, %v2060
  %v2070 = vpack.c.b16 %v2063, %v2062
  %2078 = vmatpush.bf16.msra.mxu0 0
  %2079 = vmatpush.bf16.msra.mxu0 %v2070
  %2080 = vmatpush.bf16.msra.mxu0 %v2069
  %2081 = vmatpush.bf16.msra.mxu0 %v2068
  %2082 = vmatpush.bf16.msra.mxu0 %v2067
  %2083 = vmatpush.bf16.msra.mxu0 %v2066
  %2084 = vmatpush.bf16.msra.mxu0 %v2065
  %2085 = vmatpush.bf16.msra.mxu0 %v2064
  %2086 = vmatmul.bf16.gmra.mxu0 %v1780
  %v2087 = vpop.f32.mrf.mxu0
  %v2088 = vadd.f32 0.0, %v2087
  %v2089 = vpop.f32.mrf.mxu0
  %v2090 = vadd.f32 0.0, %v2089
  %2091 = vmatmul.bf16.gmra.mxu0 %v1783
  %v2092 = vpop.f32.mrf.mxu0
  %v2093 = vadd.f32 0.0, %v2092
  %v2094 = vpop.f32.mrf.mxu0
  %v2095 = vadd.f32 0.0, %v2094
  %2096 = vdwg.mxu0
  %s2097 = scalar_lea.vmem %s14, 112
  %v2098 = vld [vmem:[%s2097] sm:$0xff]
  %v2099 = vld [vmem:[%s2097 + $0x8] sm:$0xff]
  %v2100 = vld [vmem:[%s2097 + $0x10] sm:$0xff]
  %v2101 = vld [vmem:[%s2097 + $0x18] sm:$0xff]
  %v2102 = vld [vmem:[%s2097 + $0x20] sm:$0xff]
  %v2103 = vld [vmem:[%s2097 + $0x28] sm:$0xff]
  %v2104 = vld [vmem:[%s2097 + $0x30] sm:$0xff]
  %v2106 = vsel %vm1895, %v2098, 0
  %v2109 = vsel %vm1895, %v2099, 0
  %v2112 = vsel %vm1895, %v2100, 0
  %v2115 = vsel %vm1895, %v2101, 0
  %v2118 = vsel %vm1895, %v2102, 0
  %v2121 = vsel %vm1895, %v2103, 0
  %v2124 = vsel %vm1895, %v2104, 0
  %v2127 = vsel %vm1917, %v2095, 0
  %2129 = vmatpush.msra.mxu0 0.0
  %2130 = vmatpush.msra.mxu0 0.0
  %2131 = vmatpush.msra.mxu0 0.0
  %2132 = vmatpush.msra.mxu0 0.0
  %2133 = vmatpush.msra.mxu0 0.0
  %2134 = vmatpush.msra.mxu0 0.0
  %2135 = vmatpush.msra.mxu0 0.0
  %2136 = vmatpush.msra.mxu0 0.0
  %2137 = vmatpush.msra.mxu0 0.0
  %2138 = vmatpush.msra.mxu0 0.0
  %2139 = vmatpush.msra.mxu0 0.0
  %2140 = vmatpush.msra.mxu0 0.0
  %2141 = vmatpush.msra.mxu0 %v2127
  %2142 = vmatpush.msra.mxu0 %v2093
  %2143 = vmatpush.msra.mxu0 %v2090
  %2144 = vmatpush.msra.mxu0 %v2088
  %2145 = vmatmul.f32.gmra.mxu0 %v2106
  %v2146 = vpop.f32.mrf.mxu0
  %v2147 = vadd.f32 0.0, %v2146
  %2148 = vmatmul.f32.gmra.mxu0 %v2109
  %v2149 = vpop.f32.mrf.mxu0
  %v2150 = vadd.f32 0.0, %v2149
  %2151 = vmatmul.f32.gmra.mxu0 %v2112
  %v2152 = vpop.f32.mrf.mxu0
  %v2153 = vadd.f32 0.0, %v2152
  %2154 = vmatmul.f32.gmra.mxu0 %v2115
  %v2155 = vpop.f32.mrf.mxu0
  %v2156 = vadd.f32 0.0, %v2155
  %2157 = vmatmul.f32.gmra.mxu0 %v2118
  %v2158 = vpop.f32.mrf.mxu0
  %v2159 = vadd.f32 0.0, %v2158
  %2160 = vmatmul.f32.gmra.mxu0 %v2121
  %v2161 = vpop.f32.mrf.mxu0
  %v2162 = vadd.f32 0.0, %v2161
  %2163 = vmatmul.f32.gmra.mxu0 %v2124
  %v2164 = vpop.f32.mrf.mxu0
  %v2165 = vadd.f32 0.0, %v2164
  %2166 = vdwg.mxu0
  %v2167 = vadd.f32 %v2001, %v2147
  %v2168 = vadd.f32 %v2004, %v2150
  %v2169 = vadd.f32 %v2007, %v2153
  %v2170 = vadd.f32 %v2010, %v2156
  %v2171 = vadd.f32 %v2013, %v2159
  %v2172 = vadd.f32 %v2016, %v2162
  %v2173 = vadd.f32 %v2019, %v2165
  %s2174 = scalar_lea.vmem %s13, 168
  %v2175 = vld [vmem:[%s2174] sm:$0xf]
  %v2176 = vld [vmem:[%s2174 + $0x4] sm:$0xf]
  %v2177 = vld [vmem:[%s2174 + $0x8] sm:$0xf]
  %v2178 = vld [vmem:[%s2174 + $0xc] sm:$0xf]
  %v2179 = vld [vmem:[%s2174 + $0x10] sm:$0xf]
  %v2180 = vld [vmem:[%s2174 + $0x14] sm:$0xf]
  %v2181 = vld [vmem:[%s2174 + $0x18] sm:$0xf]
  %v2182 = vld [vmem:[%s2174 + $0x1c] sm:$0xf]
  %v2183 = vld [vmem:[%s2174 + $0x20] sm:$0xf]
  %v2184 = vld [vmem:[%s2174 + $0x24] sm:$0xf]
  %v2185 = vld [vmem:[%s2174 + $0x28] sm:$0xf]
  %v2186 = vld [vmem:[%s2174 + $0x2c] sm:$0xf]
  %v2187 = vld [vmem:[%s2174 + $0x30] sm:$0xf]
  %v2188 = vld [vmem:[%s2174 + $0x34] sm:$0xf]
  %v2203 = vunpack.c.l.b16 %v2175
  %v2204 = vunpack.c.l.b16 %v2176
  %v2205 = vunpack.c.l.b16 %v2177
  %v2206 = vunpack.c.l.b16 %v2178
  %v2207 = vunpack.c.l.b16 %v2179
  %v2208 = vunpack.c.l.b16 %v2180
  %v2209 = vunpack.c.l.b16 %v2181
  %v2210 = vunpack.c.l.b16 %v2182
  %v2211 = vunpack.c.l.b16 %v2183
  %v2212 = vunpack.c.l.b16 %v2184
  %v2213 = vunpack.c.l.b16 %v2185
  %v2214 = vunpack.c.l.b16 %v2186
  %v2215 = vunpack.c.l.b16 %v2187
  %v2216 = vunpack.c.l.b16 %v2188
  %v2217 = vpack.c.b16 %v2204, %v2203
  %v2218 = vpack.c.b16 %v2206, %v2205
  %v2219 = vpack.c.b16 %v2208, %v2207
  %v2220 = vpack.c.b16 %v2210, %v2209
  %v2221 = vpack.c.b16 %v2212, %v2211
  %v2222 = vpack.c.b16 %v2214, %v2213
  %v2223 = vpack.c.b16 %v2216, %v2215
  %2231 = vmatpush.bf16.msra.mxu0 0
  %2232 = vmatpush.bf16.msra.mxu0 %v2223
  %2233 = vmatpush.bf16.msra.mxu0 %v2222
  %2234 = vmatpush.bf16.msra.mxu0 %v2221
  %2235 = vmatpush.bf16.msra.mxu0 %v2220
  %2236 = vmatpush.bf16.msra.mxu0 %v2219
  %2237 = vmatpush.bf16.msra.mxu0 %v2218
  %2238 = vmatpush.bf16.msra.mxu0 %v2217
  %2239 = vmatmul.bf16.gmra.mxu0 %v1780
  %v2240 = vpop.f32.mrf.mxu0
  %v2241 = vadd.f32 0.0, %v2240
  %v2242 = vpop.f32.mrf.mxu0
  %v2243 = vadd.f32 0.0, %v2242
  %2244 = vmatmul.bf16.gmra.mxu0 %v1783
  %v2245 = vpop.f32.mrf.mxu0
  %v2246 = vadd.f32 0.0, %v2245
  %v2247 = vpop.f32.mrf.mxu0
  %v2248 = vadd.f32 0.0, %v2247
  %2249 = vdwg.mxu0
  %s2250 = scalar_lea.vmem %s14, 168
  %v2251 = vld [vmem:[%s2250] sm:$0xff]
  %v2252 = vld [vmem:[%s2250 + $0x8] sm:$0xff]
  %v2253 = vld [vmem:[%s2250 + $0x10] sm:$0xff]
  %v2254 = vld [vmem:[%s2250 + $0x18] sm:$0xff]
  %v2255 = vld [vmem:[%s2250 + $0x20] sm:$0xff]
  %v2256 = vld [vmem:[%s2250 + $0x28] sm:$0xff]
  %v2257 = vld [vmem:[%s2250 + $0x30] sm:$0xff]
  %v2259 = vsel %vm1895, %v2251, 0
  %v2262 = vsel %vm1895, %v2252, 0
  %v2265 = vsel %vm1895, %v2253, 0
  %v2268 = vsel %vm1895, %v2254, 0
  %v2271 = vsel %vm1895, %v2255, 0
  %v2274 = vsel %vm1895, %v2256, 0
  %v2277 = vsel %vm1895, %v2257, 0
  %v2280 = vsel %vm1917, %v2248, 0
  %2282 = vmatpush.msra.mxu0 0.0
  %2283 = vmatpush.msra.mxu0 0.0
  %2284 = vmatpush.msra.mxu0 0.0
  %2285 = vmatpush.msra.mxu0 0.0
  %2286 = vmatpush.msra.mxu0 0.0
  %2287 = vmatpush.msra.mxu0 0.0
  %2288 = vmatpush.msra.mxu0 0.0
  %2289 = vmatpush.msra.mxu0 0.0
  %2290 = vmatpush.msra.mxu0 0.0
  %2291 = vmatpush.msra.mxu0 0.0
  %2292 = vmatpush.msra.mxu0 0.0
  %2293 = vmatpush.msra.mxu0 0.0
  %2294 = vmatpush.msra.mxu0 %v2280
  %2295 = vmatpush.msra.mxu0 %v2246
  %2296 = vmatpush.msra.mxu0 %v2243
  %2297 = vmatpush.msra.mxu0 %v2241
  %2298 = vmatmul.f32.gmra.mxu0 %v2259
  %v2299 = vpop.f32.mrf.mxu0
  %v2300 = vadd.f32 0.0, %v2299
  %2301 = vmatmul.f32.gmra.mxu0 %v2262
  %v2302 = vpop.f32.mrf.mxu0
  %v2303 = vadd.f32 0.0, %v2302
  %2304 = vmatmul.f32.gmra.mxu0 %v2265
  %v2305 = vpop.f32.mrf.mxu0
  %v2306 = vadd.f32 0.0, %v2305
  %2307 = vmatmul.f32.gmra.mxu0 %v2268
  %v2308 = vpop.f32.mrf.mxu0
  %v2309 = vadd.f32 0.0, %v2308
  %2310 = vmatmul.f32.gmra.mxu0 %v2271
  %v2311 = vpop.f32.mrf.mxu0
  %v2312 = vadd.f32 0.0, %v2311
  %2313 = vmatmul.f32.gmra.mxu0 %v2274
  %v2314 = vpop.f32.mrf.mxu0
  %v2315 = vadd.f32 0.0, %v2314
  %2316 = vmatmul.f32.gmra.mxu0 %v2277
  %v2317 = vpop.f32.mrf.mxu0
  %v2318 = vadd.f32 0.0, %v2317
  %2319 = vdwg.mxu0
  %v2320 = vadd.f32 %v2167, %v2300
  %v2321 = vadd.f32 %v2168, %v2303
  %v2322 = vadd.f32 %v2169, %v2306
  %v2323 = vadd.f32 %v2170, %v2309
  %v2324 = vadd.f32 %v2171, %v2312
  %v2325 = vadd.f32 %v2172, %v2315
  %v2326 = vadd.f32 %v2173, %v2318
  %v2327 = vtanh.pop %v2320
  %v2328 = vtanh.pop %v2321
  %v2329 = vtanh.pop %v2322
  %v2330 = vtanh.pop %v2323
  %v2331 = vtanh.pop %v2324
  %v2332 = vtanh.pop %v2325
  %v2333 = vtanh.pop %v2326
  %vm2334 = vcmask 687104
  %2335 = vst.msk [vmem:[%s15] sm:$0xff] %vm2334, %v2327
  %2336 = vst.msk [vmem:[%s15 + $0x8] sm:$0xff] %vm2334, %v2328
  %2337 = vst.msk [vmem:[%s15 + $0x10] sm:$0xff] %vm2334, %v2329
  %2338 = vst.msk [vmem:[%s15 + $0x18] sm:$0xff] %vm2334, %v2330
  %2339 = vst.msk [vmem:[%s15 + $0x20] sm:$0xff] %vm2334, %v2331
  %2340 = vst.msk [vmem:[%s15 + $0x28] sm:$0xff] %vm2334, %v2332
  %2341 = vst.msk [vmem:[%s15 + $0x30] sm:$0xff] %vm2334, %v2333
  // Predicated region
  $region62: #{generator_forward.1} parent=0 // pred_check
    _
  $region63: #{generator_forward.1} parent=0 // pred_check_branch
    %2343 = sbr.rel (0) target = $region65
  $region64: #{generator_forward.1} parent=0 // pred_region
    _
  $region65: #{generator_forward.1} parent=0 // pred_fallthru
    _
  // Predicated region
  $region66: #{generator_forward.1} parent=0 // pred_check
    _
  $region67: #{generator_forward.1} parent=0 // pred_check_branch
    %2345 = sbr.rel (0) target = $region69
  $region68: #{generator_forward.1} parent=0 // pred_region
    _
  $region69: #{generator_forward.1} parent=0 // pred_fallthru
    _

</llo_original>
